<compile_context>
chip_gen: v6e
topology: v6e:2x2x1
jax: 0.10.0
libtpu: 0.0.40
codegen_flags: <defaults>
</compile_context>

<pallas_src>
import functools

import jax
import jax.numpy as jnp
from jax.experimental import pallas as pl
from jax.experimental.pallas import tpu as pltpu


def gce_kernel(pred_ref, tgt_ref, out_ref, *, q: float, c: int, pack: int,
               n_total: int, block_rows: int):
    i = pl.program_id(0)

    x = pred_ref[...].astype(jnp.float32)          # (tn, W), W = pack * c
    tn, w = x.shape
    tgt = tgt_ref[...]                             # (tn, pack) int32 target lane

    lane = jax.lax.broadcasted_iota(jnp.int32, (tn, w), 1)

    # --- per original-row (per lane-group) max, expanded across its C lanes.
    # Static Python loop over the (small) pack factor; comparisons against
    # constants avoid an integer divide.
    m_exp = jnp.zeros((tn, w), jnp.float32)
    for g in range(pack):
        in_g = (lane >= g * c) & (lane < (g + 1) * c)
        m_g = jnp.max(jnp.where(in_g, x, -jnp.inf), axis=1, keepdims=True)
        m_exp = jnp.where(in_g, m_g, m_exp)

    e = jnp.exp(x - m_exp)                         # (tn, W), full lane util

    # --- segmented sums over each group's C lanes on the MXU.
    li = jax.lax.broadcasted_iota(jnp.int32, (w, pack), 0)
    gi = jax.lax.broadcasted_iota(jnp.int32, (w, pack), 1)
    sel = ((li >= gi * c) & (li < (gi + 1) * c)).astype(jnp.float32)   # (W, pack)

    denom = jnp.dot(e, sel, preferred_element_type=jnp.float32,
                    precision=jax.lax.Precision.HIGHEST)               # (tn, pack)

    # Expand each group's target lane across its C lanes (tiny MXU matmul;
    # values < W are exact), gather exp(x_y - m) with a select, then the same
    # segmented sum picks out the single surviving term per group.
    gi2 = jax.lax.broadcasted_iota(jnp.int32, (pack, w), 0)
    li2 = jax.lax.broadcasted_iota(jnp.int32, (pack, w), 1)
    expand = ((li2 >= gi2 * c) & (li2 < (gi2 + 1) * c)).astype(jnp.float32)
    tgt_lanes = jnp.dot(tgt.astype(jnp.float32), expand,
                        preferred_element_type=jnp.float32,
                        precision=jax.lax.Precision.HIGHEST)           # (tn, W)
    e_y = jnp.where(lane.astype(jnp.float32) == tgt_lanes, e, 0.0)
    num = jnp.dot(e_y, sel, preferred_element_type=jnp.float32,
                  precision=jax.lax.Precision.HIGHEST)                 # (tn, pack)

    # Exact divide (review: approx EUP reciprocal only pays per-element).
    # denom >= 1 for real rows (the max lane contributes exp(0)).
    p_y = num / denom
    # torch.clamp(pred, max=1.0) applied to the gathered probability.
    p_y = jnp.minimum(p_y, 1.0)

    # p_y ** q via exp(q * log): p_y == 0 -> log = -inf -> exp = 0, matching
    # torch.pow(0, q) == 0 for the underflow case.
    pow_q = jnp.exp(q * jnp.log(p_y))
    loss = (1.0 - pow_q) / q                                           # (tn, pack)

    # Mask padding rows (batch padding to a multiple of `pack`, and the
    # unspecified rows of the last partial tile).  Keep this a select so
    # NaN/Inf from garbage inputs contributes exactly 0.
    row = jax.lax.broadcasted_iota(jnp.int32, (tn, pack), 0) + i * block_rows
    grp = jax.lax.broadcasted_iota(jnp.int32, (tn, pack), 1)
    orig = row * pack + grp
    loss = jnp.where(orig < n_total, loss, 0.0)

    # Lane-dense per-tile partial sum (one 128-wide row per grid step).
    out_ref[...] = jnp.full((1, 128), jnp.sum(loss), dtype=jnp.float32)


def gce_loss(pred: jax.Array, labels: jax.Array, q: float = 0.3,
             vmem_budget_bytes: int = 24 << 20) -> jax.Array:
    """pred: (N, C) float (any float dtype), labels: (N,) int. Scalar f32 loss."""
    n, c = pred.shape

    # Lane-packing factor: pack `pack` original rows per 128-lane vreg row.
    pack = max(1, 128 // c) if c <= 128 else 1
    w = pack * c

    labels = labels.astype(jnp.int32)
    r = pl.cdiv(n, pack)                     # packed rows
    n_pad = r * pack
    if n_pad != n:                           # pad batch to a multiple of `pack`
        pred = jnp.pad(pred, ((0, n_pad - n), (0, 0)))
        labels = jnp.pad(labels, (0, n_pad - n))
    pred_p = pred.reshape(r, w)
    # Target lane inside its packed row: label + C * slot-in-group.
    tgt = (labels + c * (jnp.arange(n_pad, dtype=jnp.int32) % pack)).reshape(r, pack)

    # Row tile from a VMEM byte budget (review: >= 1-4 MiB of pred per tile so
    # the ~0.35 us per-grid-step overhead is amortized), sized so
    # double-buffered inputs + lane-padded labels + ~5 f32 temporaries stay
    # well under v7x's 64 MiB physical VMEM / the 48 MiB limit we request.
    per_row = (2 * w * pred.dtype.itemsize   # pred tile, double-buffered
               + 2 * 128 * 4                 # labels tile, lane-padded, x2
               + 5 * w * 4)                  # live f32 temporaries in kernel
    tn = max(8, (vmem_budget_bytes // per_row) // 8 * 8)   # multiple of 8
    if r <= tn:
        tn = r                               # single full-extent block
    num_tiles = pl.cdiv(r, tn)

    cost = pl.CostEstimate(
        flops=8 * n_pad * c,
        transcendentals=n_pad * (c + 2),
        bytes_accessed=n_pad * c * pred.dtype.itemsize + n_pad * 4
                       + num_tiles * 128 * 4)

    partials = pl.pallas_call(
        functools.partial(gce_kernel, q=q, c=c, pack=pack, n_total=n,
                          block_rows=tn),
        out_shape=jax.ShapeDtypeStruct((num_tiles, 128), jnp.float32),
        grid=(num_tiles,),
        in_specs=[
            pl.BlockSpec((tn, w), lambda i: (i, 0)),       # packed logits tile
            pl.BlockSpec((tn, pack), lambda i: (i, 0)),    # packed target lanes
        ],
        out_specs=pl.BlockSpec((1, 128), lambda i: (i, 0)),
        compiler_params=pltpu.CompilerParams(
            dimension_semantics=("parallel",),
            vmem_limit_bytes=48 * 1024 * 1024),
        cost_estimate=cost,
    )(pred_p, tgt)

    return jnp.sum(partials[:, 0]) / n       # mean over the real batch


def gce_loss_ref(pred, labels, q=0.3, num_classes=None):
    """Pure-JAX reference mirroring the PyTorch module."""
    num_classes = num_classes if num_classes is not None else pred.shape[1]
    p = jax.nn.softmax(pred.astype(jnp.float32), axis=1)
    p = jnp.minimum(p, 1.0)
    one_hot = jax.nn.one_hot(labels, num_classes, dtype=jnp.float32)
    p_y = jnp.sum(one_hot * p, axis=1)
    loss = (1.0 - jnp.power(p_y, q)) / q
    return jnp.mean(loss)


if __name__ == "__main__":
    # GCELoss(num_classes=32, q=0.3); batch of 8 logit rows.
    num_classes = 32
    batch = 8
    q = 0.3

    key = jax.random.PRNGKey(0)
    k_pred, k_lab = jax.random.split(key)
    pred = jax.random.normal(k_pred, (batch, num_classes), dtype=jnp.float32)
    labels = jax.random.randint(k_lab, (batch,), 0, num_classes, dtype=jnp.int32)

    out = jax.block_until_ready(gce_loss(pred, labels, q=q))
    ref = gce_loss_ref(pred, labels, q=q, num_classes=num_classes)
    assert jnp.allclose(out, ref, rtol=5e-4, atol=5e-4), (out, ref)

    # Extra check: batch not a multiple of the lane-pack factor (exercises the
    # padding + masking path).
    k_pred2, k_lab2 = jax.random.split(jax.random.PRNGKey(0), 2)
    pred2 = jax.random.normal(k_pred2, (13, num_classes), dtype=jnp.float32)
    labels2 = jax.random.randint(k_lab2, (13,), 0, num_classes, dtype=jnp.int32)
    out2 = jax.block_until_ready(gce_loss(pred2, labels2, q=q))
    ref2 = gce_loss_ref(pred2, labels2, q=q, num_classes=num_classes)
    assert jnp.allclose(out2, ref2, rtol=5e-4, atol=5e-4), (out2, ref2)

    print("KERNEL_OK")
</pallas_src>

<mosaic_0001>
module attributes {stable_mosaic.version = 11 : i64} {
  func.func @gce_kernel(%arg0: i32, %arg1: memref<2x128xf32, #tpu.memory_space<vmem>>, %arg2: memref<2x4xi32, #tpu.memory_space<vmem>>, %arg3: memref<1x128xf32, #tpu.memory_space<vmem>>) attributes {dimension_semantics = [#tpu.dimension_semantics<parallel>], iteration_bounds = array<i64: 1>, scalar_prefetch = 0 : i64, scratch_operands = 0 : i64, tpu.core_type = #tpu.core_type<tc>, window_params = [{transform_indices = @transform_0, window_bounds = array<i64: 2, 128>}, {transform_indices = @transform_1, window_bounds = array<i64: 2, 4>}, {transform_indices = @transform_2, window_bounds = array<i64: 1, 128>}]} {
    %c0 = arith.constant 0 : index
    %c0_0 = arith.constant 0 : index
    %0 = vector.load %arg1[%c0, %c0_0] : memref<2x128xf32, #tpu.memory_space<vmem>>, vector<2x128xf32>
    %c0_1 = arith.constant 0 : index
    %c0_2 = arith.constant 0 : index
    %1 = vector.load %arg2[%c0_1, %c0_2] : memref<2x4xi32, #tpu.memory_space<vmem>>, vector<2x4xi32>
    %2 = tpu.iota {dimensions = array<i32: 1>} : vector<2x128xi32>
    %cst = arith.constant 0.000000e+00 : f32
    %3 = vector.broadcast %cst : f32 to vector<2x128xf32>
    %c0_i32 = arith.constant 0 : i32
    %4 = vector.broadcast %c0_i32 : i32 to vector<2x128xi32>
    %5 = arith.cmpi sge, %2, %4 : vector<2x128xi32>
    %c32_i32 = arith.constant 32 : i32
    %6 = vector.broadcast %c32_i32 : i32 to vector<2x128xi32>
    %7 = arith.cmpi slt, %2, %6 : vector<2x128xi32>
    %8 = arith.andi %5, %7 : vector<2x128xi1>
    %cst_3 = arith.constant 0xFF800000 : f32
    %9 = vector.broadcast %cst_3 : f32 to vector<2x128xf32>
    %10 = arith.select %8, %0, %9 : vector<2x128xi1>, vector<2x128xf32>
    %cst_4 = arith.constant dense<0xFF800000> : vector<2xf32>
    %11 = vector.multi_reduction <maximumf>, %10, %cst_4 [1] : vector<2x128xf32> to vector<2xf32>
    %12 = vector.shape_cast %11 : vector<2xf32> to vector<2x1xf32>
    %13 = vector.shape_cast %12 : vector<2x1xf32> to vector<2x1xf32>
    %14 = vector.broadcast %13 : vector<2x1xf32> to vector<2x128xf32>
    %15 = arith.select %8, %14, %3 : vector<2x128xi1>, vector<2x128xf32>
    %c32_i32_5 = arith.constant 32 : i32
    %16 = vector.broadcast %c32_i32_5 : i32 to vector<2x128xi32>
    %17 = arith.cmpi sge, %2, %16 : vector<2x128xi32>
    %c64_i32 = arith.constant 64 : i32
    %18 = vector.broadcast %c64_i32 : i32 to vector<2x128xi32>
    %19 = arith.cmpi slt, %2, %18 : vector<2x128xi32>
    %20 = arith.andi %17, %19 : vector<2x128xi1>
    %cst_6 = arith.constant 0xFF800000 : f32
    %21 = vector.broadcast %cst_6 : f32 to vector<2x128xf32>
    %22 = arith.select %20, %0, %21 : vector<2x128xi1>, vector<2x128xf32>
    %cst_7 = arith.constant dense<0xFF800000> : vector<2xf32>
    %23 = vector.multi_reduction <maximumf>, %22, %cst_7 [1] : vector<2x128xf32> to vector<2xf32>
    %24 = vector.shape_cast %23 : vector<2xf32> to vector<2x1xf32>
    %25 = vector.shape_cast %24 : vector<2x1xf32> to vector<2x1xf32>
    %26 = vector.broadcast %25 : vector<2x1xf32> to vector<2x128xf32>
    %27 = arith.select %20, %26, %15 : vector<2x128xi1>, vector<2x128xf32>
    %c64_i32_8 = arith.constant 64 : i32
    %28 = vector.broadcast %c64_i32_8 : i32 to vector<2x128xi32>
    %29 = arith.cmpi sge, %2, %28 : vector<2x128xi32>
    %c96_i32 = arith.constant 96 : i32
    %30 = vector.broadcast %c96_i32 : i32 to vector<2x128xi32>
    %31 = arith.cmpi slt, %2, %30 : vector<2x128xi32>
    %32 = arith.andi %29, %31 : vector<2x128xi1>
    %cst_9 = arith.constant 0xFF800000 : f32
    %33 = vector.broadcast %cst_9 : f32 to vector<2x128xf32>
    %34 = arith.select %32, %0, %33 : vector<2x128xi1>, vector<2x128xf32>
    %cst_10 = arith.constant dense<0xFF800000> : vector<2xf32>
    %35 = vector.multi_reduction <maximumf>, %34, %cst_10 [1] : vector<2x128xf32> to vector<2xf32>
    %36 = vector.shape_cast %35 : vector<2xf32> to vector<2x1xf32>
    %37 = vector.shape_cast %36 : vector<2x1xf32> to vector<2x1xf32>
    %38 = vector.broadcast %37 : vector<2x1xf32> to vector<2x128xf32>
    %39 = arith.select %32, %38, %27 : vector<2x128xi1>, vector<2x128xf32>
    %c96_i32_11 = arith.constant 96 : i32
    %40 = vector.broadcast %c96_i32_11 : i32 to vector<2x128xi32>
    %41 = arith.cmpi sge, %2, %40 : vector<2x128xi32>
    %c128_i32 = arith.constant 128 : i32
    %42 = vector.broadcast %c128_i32 : i32 to vector<2x128xi32>
    %43 = arith.cmpi slt, %2, %42 : vector<2x128xi32>
    %44 = arith.andi %41, %43 : vector<2x128xi1>
    %cst_12 = arith.constant 0xFF800000 : f32
    %45 = vector.broadcast %cst_12 : f32 to vector<2x128xf32>
    %46 = arith.select %44, %0, %45 : vector<2x128xi1>, vector<2x128xf32>
    %cst_13 = arith.constant dense<0xFF800000> : vector<2xf32>
    %47 = vector.multi_reduction <maximumf>, %46, %cst_13 [1] : vector<2x128xf32> to vector<2xf32>
    %48 = vector.shape_cast %47 : vector<2xf32> to vector<2x1xf32>
    %49 = vector.shape_cast %48 : vector<2x1xf32> to vector<2x1xf32>
    %50 = vector.broadcast %49 : vector<2x1xf32> to vector<2x128xf32>
    %51 = arith.select %44, %50, %39 : vector<2x128xi1>, vector<2x128xf32>
    %52 = arith.subf %0, %51 : vector<2x128xf32>
    %53 = math.exp %52 : vector<2x128xf32>
    %54 = tpu.iota {dimensions = array<i32: 0>} : vector<128x4xi32>
    %55 = tpu.iota {dimensions = array<i32: 1>} : vector<128x4xi32>
    %c32_i32_14 = arith.constant 32 : i32
    %56 = vector.broadcast %c32_i32_14 : i32 to vector<128x4xi32>
    %57 = arith.muli %55, %56 : vector<128x4xi32>
    %58 = arith.cmpi sge, %54, %57 : vector<128x4xi32>
    %c1_i32 = arith.constant 1 : i32
    %59 = vector.broadcast %c1_i32 : i32 to vector<128x4xi32>
    %60 = arith.addi %55, %59 : vector<128x4xi32>
    %c32_i32_15 = arith.constant 32 : i32
    %61 = vector.broadcast %c32_i32_15 : i32 to vector<128x4xi32>
    %62 = arith.muli %60, %61 : vector<128x4xi32>
    %63 = arith.cmpi slt, %54, %62 : vector<128x4xi32>
    %64 = arith.andi %58, %63 : vector<128x4xi1>
    %65 = arith.extui %64 : vector<128x4xi1> to vector<128x4xi32>
    %66 = arith.sitofp %65 : vector<128x4xi32> to vector<128x4xf32>
    %cst_16 = arith.constant dense<0.000000e+00> : vector<2x4xf32>
    %67 = tpu.matmul %53, %66, %cst_16 {dimension_numbers = #tpu.dot_dimension_numbers<[1], [0], [0], [1], [0, 0, 1, 1], [], []>, precision = #tpu.contract_precision<fp32>} : vector<2x128xf32>, vector<128x4xf32>, vector<2x4xf32> -> vector<2x4xf32>
    %68 = tpu.iota {dimensions = array<i32: 0>} : vector<4x128xi32>
    %69 = tpu.iota {dimensions = array<i32: 1>} : vector<4x128xi32>
    %c32_i32_17 = arith.constant 32 : i32
    %70 = vector.broadcast %c32_i32_17 : i32 to vector<4x128xi32>
    %71 = arith.muli %68, %70 : vector<4x128xi32>
    %72 = arith.cmpi sge, %69, %71 : vector<4x128xi32>
    %c1_i32_18 = arith.constant 1 : i32
    %73 = vector.broadcast %c1_i32_18 : i32 to vector<4x128xi32>
    %74 = arith.addi %68, %73 : vector<4x128xi32>
    %c32_i32_19 = arith.constant 32 : i32
    %75 = vector.broadcast %c32_i32_19 : i32 to vector<4x128xi32>
    %76 = arith.muli %74, %75 : vector<4x128xi32>
    %77 = arith.cmpi slt, %69, %76 : vector<4x128xi32>
    %78 = arith.andi %72, %77 : vector<4x128xi1>
    %79 = arith.extui %78 : vector<4x128xi1> to vector<4x128xi32>
    %80 = arith.sitofp %79 : vector<4x128xi32> to vector<4x128xf32>
    %81 = arith.sitofp %1 : vector<2x4xi32> to vector<2x4xf32>
    %cst_20 = arith.constant dense<0.000000e+00> : vector<2x128xf32>
    %82 = tpu.matmul %81, %80, %cst_20 {dimension_numbers = #tpu.dot_dimension_numbers<[1], [0], [0], [1], [0, 0, 1, 1], [], []>, precision = #tpu.contract_precision<fp32>} : vector<2x4xf32>, vector<4x128xf32>, vector<2x128xf32> -> vector<2x128xf32>
    %83 = arith.sitofp %2 : vector<2x128xi32> to vector<2x128xf32>
    %84 = arith.cmpf oeq, %83, %82 : vector<2x128xf32>
    %cst_21 = arith.constant 0.000000e+00 : f32
    %85 = vector.broadcast %cst_21 : f32 to vector<2x128xf32>
    %86 = arith.select %84, %53, %85 : vector<2x128xi1>, vector<2x128xf32>
    %cst_22 = arith.constant dense<0.000000e+00> : vector<2x4xf32>
    %87 = tpu.matmul %86, %66, %cst_22 {dimension_numbers = #tpu.dot_dimension_numbers<[1], [0], [0], [1], [0, 0, 1, 1], [], []>, precision = #tpu.contract_precision<fp32>} : vector<2x128xf32>, vector<128x4xf32>, vector<2x4xf32> -> vector<2x4xf32>
    %88 = arith.divf %87, %67 : vector<2x4xf32>
    %cst_23 = arith.constant 1.000000e+00 : f32
    %89 = vector.broadcast %cst_23 : f32 to vector<2x4xf32>
    %90 = arith.minimumf %88, %89 : vector<2x4xf32>
    %91 = math.log %90 : vector<2x4xf32>
    %cst_24 = arith.constant 3.000000e-01 : f32
    %92 = vector.broadcast %cst_24 : f32 to vector<2x4xf32>
    %93 = arith.mulf %92, %91 : vector<2x4xf32>
    %94 = math.exp %93 : vector<2x4xf32>
    %cst_25 = arith.constant 1.000000e+00 : f32
    %95 = vector.broadcast %cst_25 : f32 to vector<2x4xf32>
    %96 = arith.subf %95, %94 : vector<2x4xf32>
    %cst_26 = arith.constant 3.000000e-01 : f32
    %97 = vector.broadcast %cst_26 : f32 to vector<2x4xf32>
    %98 = arith.divf %96, %97 : vector<2x4xf32>
    %99 = tpu.iota {dimensions = array<i32: 0>} : vector<2x4xi32>
    %c2_i32 = arith.constant 2 : i32
    %100 = arith.muli %arg0, %c2_i32 : i32
    %101 = vector.broadcast %100 : i32 to vector<2x4xi32>
    %102 = arith.addi %99, %101 : vector<2x4xi32>
    %103 = tpu.iota {dimensions = array<i32: 1>} : vector<2x4xi32>
    %c4_i32 = arith.constant 4 : i32
    %104 = vector.broadcast %c4_i32 : i32 to vector<2x4xi32>
    %105 = arith.muli %102, %104 : vector<2x4xi32>
    %106 = arith.addi %105, %103 : vector<2x4xi32>
    %c8_i32 = arith.constant 8 : i32
    %107 = vector.broadcast %c8_i32 : i32 to vector<2x4xi32>
    %108 = arith.cmpi slt, %106, %107 : vector<2x4xi32>
    %cst_27 = arith.constant 0.000000e+00 : f32
    %109 = vector.broadcast %cst_27 : f32 to vector<2x4xf32>
    %110 = arith.select %108, %98, %109 : vector<2x4xi1>, vector<2x4xf32>
    %111 = vector.shape_cast %110 : vector<2x4xf32> to vector<1x2x4xf32>
    %cst_28 = arith.constant dense<0.000000e+00> : vector<1xf32>
    %112 = vector.multi_reduction <add>, %111, %cst_28 [1, 2] : vector<1x2x4xf32> to vector<1xf32>
    %113 = vector.shape_cast %112 : vector<1xf32> to vector<1x1x1xf32>
    %114 = vector.extract %113[0, 0, 0] : f32 from vector<1x1x1xf32>
    %115 = vector.broadcast %114 : f32 to vector<1x128xf32>
    %c0_29 = arith.constant 0 : index
    %c0_30 = arith.constant 0 : index
    %116 = vector.load %arg3[%c0_29, %c0_30] : memref<1x128xf32, #tpu.memory_space<vmem>>, vector<1x128xf32>
    tpu.vector_store %arg3[%c0_29, %c0_30], %115 {strides = array<i32>} : memref<1x128xf32, #tpu.memory_space<vmem>>, vector<1x128xf32>,
    return
  }
  func.func @transform_0(%arg0: i32) -> (i32, i32) {
    %c0_i32 = arith.constant 0 : i32
    %c0_i32_0 = arith.constant 0 : i32
    return %arg0, %c0_i32 : i32, i32
  }
  func.func @transform_1(%arg0: i32) -> (i32, i32) {
    %c0_i32 = arith.constant 0 : i32
    %c0_i32_0 = arith.constant 0 : i32
    return %arg0, %c0_i32 : i32, i32
  }
  func.func @transform_2(%arg0: i32) -> (i32, i32) {
    %c0_i32 = arith.constant 0 : i32
    %c0_i32_0 = arith.constant 0 : i32
    return %arg0, %c0_i32 : i32, i32
  }
}

</mosaic_0001>

<llo_original>
// kernel: tpu_custom_call.1
$region0: #{tpu_custom_call.1}
  #allocation0 [shape = 'u32[]', space=smem, size = 0x4, offset = 0x4, fixed_abs, tag = 'smem constant byte address 0x4 - core index']
  #allocation1 [shape = 'u32[144,128]{1,0:T(1,128)}', space=vmem, size = 0x12000, scoped, tag = 'internal scratch']
  %s0 = inlined_call_operand.hbm [shape: f32[2,128], index: 0, kind: input, shape index: {}]
  %s1 = inlined_call_operand.hbm [shape: s32[2,4], index: 1, kind: input, shape index: {}]
  %s2 = inlined_call_operand.hbm [shape: f32[1,128], index: 2, kind: output, shape index: {}]
  %s3 = sld [smem:[#allocation0]]
  $region26: #{tpu_custom_call.1} parent=0
    _
  %s5 = ssub.s32 1, %s3
  %s6 = scalar_select 0, %s5, %s3
  $region1: #{tpu_custom_call.1} parent=0
    #allocation2 [shape = 'u8[1024]{0}', space=vmem, size = 0x400, scoped, tag = 'input window, operand 0, single buffered']
    #allocation3 [shape = 's32[1]{0}', space=sflag, size = 0x4, scoped, tag = 'scoped memory for tpu_custom_call.1']
    #allocation4 [shape = 's32[1]{0}', space=sflag, size = 0x4, scoped, tag = 'scoped memory for tpu_custom_call.1']
    #allocation5 [shape = 'u8[1024]{0}', space=vmem, size = 0x400, scoped, tag = 'input window, operand 1, single buffered']
    #allocation6 [shape = 's32[1]{0}', space=sflag, size = 0x4, scoped, tag = 'scoped memory for tpu_custom_call.1']
    #allocation7 [shape = 'u8[512]{0}', space=vmem, size = 0x400, scoped, tag = 'output window, operand 0, single buffered']
    %7 = vsyncpa [#allocation3], 0
    %8 = vsyncpa [#allocation6], 0
    %9 = vsyncpa [#allocation4], 0
    // Predicated region
    $region2: #{tpu_custom_call.1} parent=1 // pred_check
      _
    $region3: #{tpu_custom_call.1} parent=1 // pred_check_branch
      %11 = sbr.rel (0) target = $region5
    $region4: #{tpu_custom_call.1} parent=1 // pred_region
      %s13 = ssub.s32 32, 32
      %14 = vsyncadd [#allocation3], %s13
      %s16 = sshll.u32 [#allocation2], 4
      %s17 = int_to_ptr.vmem [resolvable:$true] %s16
      %19 = dma.hbm_to_vmem [thread:$0]  %s0, 32, %s17, [#allocation3]
    $region5: #{tpu_custom_call.1} parent=1 // pred_fallthru
      _
    // Predicated region
    $region6: #{tpu_custom_call.1} parent=1 // pred_check
      _
    $region7: #{tpu_custom_call.1} parent=1 // pred_check_branch
      %21 = sbr.rel (0) target = $region9
    $region8: #{tpu_custom_call.1} parent=1 // pred_region
      %s23 = ssub.s32 32, 32
      %24 = vsyncadd [#allocation6], %s23
      %s26 = sshll.u32 [#allocation5], 4
      %s27 = int_to_ptr.vmem [resolvable:$true] %s26
      %29 = dma.hbm_to_vmem [thread:$0]  %s1, 32, %s27, [#allocation6]
    $region9: #{tpu_custom_call.1} parent=1 // pred_fallthru
      _
    // Predicated region
    $region10: #{tpu_custom_call.1} parent=1 // pred_check
      _
    $region11: #{tpu_custom_call.1} parent=1 // pred_check_branch
      %31 = sbr.rel (0) target = $region13
    $region12: #{tpu_custom_call.1} parent=1 // pred_region
      %32 = dma.done [#allocation3], 32
    $region13: #{tpu_custom_call.1} parent=1 // pred_fallthru
      _
    // Predicated region
    $region14: #{tpu_custom_call.1} parent=1 // pred_check
      _
    $region15: #{tpu_custom_call.1} parent=1 // pred_check_branch
      %34 = sbr.rel (0) target = $region17
    $region16: #{tpu_custom_call.1} parent=1 // pred_region
      %35 = dma.done [#allocation6], 32
    $region17: #{tpu_custom_call.1} parent=1 // pred_fallthru
      _
    %v36 = vld [vmem:[#allocation2] sm:$0x3]
    %v37 = vld [vmem:[#allocation5] sm:$0x3]
    %v38 = vlaneseq
    %v39 = vand.u32 %v38, 127
    %vm40 = vcmp.ge.s32.totalorder %v39, 0
    %vm41 = vcmp.lt.s32.totalorder %v39, 32
    %vm42 = vmand %vm40, %vm41
    %v43 = vsel %vm42, %v36, -inf
    %vm44 = vcmask 1041408
    %v45 = vsel %vm44, %v43, -inf
    %46 = vmax.xlane.f32.xlu0 %v45
    %v47 = vpop.xlane.xlu0 %46
    %v48 = vsel %vm42, %v47, 0.0
    %vm49 = vcmp.ge.s32.totalorder %v39, 32
    %vm50 = vcmp.lt.s32.totalorder %v39, 64
    %vm51 = vmand %vm49, %vm50
    %v52 = vsel %vm51, %v36, -inf
    %v53 = vsel %vm44, %v52, -inf
    %54 = vmax.xlane.f32.xlu0 %v53
    %v55 = vpop.xlane.xlu0 %54
    %v56 = vsel %vm51, %v55, %v48
    %vm57 = vcmp.ge.s32.totalorder %v39, 64
    %vm58 = vcmp.lt.s32.totalorder %v39, 96
    %vm59 = vmand %vm57, %vm58
    %v60 = vsel %vm59, %v36, -inf
    %v61 = vsel %vm44, %v60, -inf
    %62 = vmax.xlane.f32.xlu0 %v61
    %v63 = vpop.xlane.xlu0 %62
    %v64 = vsel %vm59, %v63, %v56
    %vm65 = vcmp.ge.s32.totalorder %v39, 96
    %vm66 = vcmp.lt.s32.totalorder %v39, 128
    %vm67 = vmand %vm65, %vm66
    %v68 = vsel %vm67, %v36, -inf
    %v69 = vsel %vm44, %v68, -inf
    %70 = vmax.xlane.f32.xlu0 %v69
    %v71 = vpop.xlane.xlu0 %70
    %v72 = vsel %vm67, %v71, %v64
    %v73 = vsub.f32 %v36, %v72
    %v74 = vmul.f32 %v73, 1.442695
    %v75 = vpow.pop %v74
    %v76 = vlaneseq
    %v77 = vshrl.u32 %v76, 7
    %v78 = vadd.s32 %v77, 8
    %v79 = vadd.s32 %v77, 16
    %v80 = vadd.s32 %v77, 24
    %v81 = vadd.s32 %v77, 32
    %v82 = vadd.s32 %v77, 40
    %v83 = vadd.s32 %v77, 48
    %v84 = vadd.s32 %v77, 56
    %v85 = vadd.s32 %v77, 64
    %v86 = vadd.s32 %v77, 72
    %v87 = vadd.s32 %v77, 80
    %v88 = vadd.s32 %v77, 88
    %v89 = vadd.s32 %v77, 96
    %v90 = vadd.s32 %v77, 104
    %v91 = vadd.s32 %v77, 112
    %v92 = vadd.s32 %v77, 120
    %v93 = vmul.u32 %v39, 32
    %vm94 = vcmp.ge.s32.totalorder %v77, %v93
    %vm95 = vcmp.ge.s32.totalorder %v78, %v93
    %vm96 = vcmp.ge.s32.totalorder %v79, %v93
    %vm97 = vcmp.ge.s32.totalorder %v80, %v93
    %vm98 = vcmp.ge.s32.totalorder %v81, %v93
    %vm99 = vcmp.ge.s32.totalorder %v82, %v93
    %vm100 = vcmp.ge.s32.totalorder %v83, %v93
    %vm101 = vcmp.ge.s32.totalorder %v84, %v93
    %vm102 = vcmp.ge.s32.totalorder %v85, %v93
    %vm103 = vcmp.ge.s32.totalorder %v86, %v93
    %vm104 = vcmp.ge.s32.totalorder %v87, %v93
    %vm105 = vcmp.ge.s32.totalorder %v88, %v93
    %vm106 = vcmp.ge.s32.totalorder %v89, %v93
    %vm107 = vcmp.ge.s32.totalorder %v90, %v93
    %vm108 = vcmp.ge.s32.totalorder %v91, %v93
    %vm109 = vcmp.ge.s32.totalorder %v92, %v93
    %v110 = vadd.s32 %v39, 1
    %v111 = vmul.u32 %v110, 32
    %vm112 = vcmp.lt.s32.totalorder %v77, %v111
    %vm113 = vcmp.lt.s32.totalorder %v78, %v111
    %vm114 = vcmp.lt.s32.totalorder %v79, %v111
    %vm115 = vcmp.lt.s32.totalorder %v80, %v111
    %vm116 = vcmp.lt.s32.totalorder %v81, %v111
    %vm117 = vcmp.lt.s32.totalorder %v82, %v111
    %vm118 = vcmp.lt.s32.totalorder %v83, %v111
    %vm119 = vcmp.lt.s32.totalorder %v84, %v111
    %vm120 = vcmp.lt.s32.totalorder %v85, %v111
    %vm121 = vcmp.lt.s32.totalorder %v86, %v111
    %vm122 = vcmp.lt.s32.totalorder %v87, %v111
    %vm123 = vcmp.lt.s32.totalorder %v88, %v111
    %vm124 = vcmp.lt.s32.totalorder %v89, %v111
    %vm125 = vcmp.lt.s32.totalorder %v90, %v111
    %vm126 = vcmp.lt.s32.totalorder %v91, %v111
    %vm127 = vcmp.lt.s32.totalorder %v92, %v111
    %vm128 = vmand %vm94, %vm112
    %vm129 = vmand %vm95, %vm113
    %vm130 = vmand %vm96, %vm114
    %vm131 = vmand %vm97, %vm115
    %vm132 = vmand %vm98, %vm116
    %vm133 = vmand %vm99, %vm117
    %vm134 = vmand %vm100, %vm118
    %vm135 = vmand %vm101, %vm119
    %vm136 = vmand %vm102, %vm120
    %vm137 = vmand %vm103, %vm121
    %vm138 = vmand %vm104, %vm122
    %vm139 = vmand %vm105, %vm123
    %vm140 = vmand %vm106, %vm124
    %vm141 = vmand %vm107, %vm125
    %vm142 = vmand %vm108, %vm126
    %vm143 = vmand %vm109, %vm127
    %v144 = vsel %vm128, 1, 0
    %v145 = vsel %vm129, 1, 0
    %v146 = vsel %vm130, 1, 0
    %v147 = vsel %vm131, 1, 0
    %v148 = vsel %vm132, 1, 0
    %v149 = vsel %vm133, 1, 0
    %v150 = vsel %vm134, 1, 0
    %v151 = vsel %vm135, 1, 0
    %v152 = vsel %vm136, 1, 0
    %v153 = vsel %vm137, 1, 0
    %v154 = vsel %vm138, 1, 0
    %v155 = vsel %vm139, 1, 0
    %v156 = vsel %vm140, 1, 0
    %v157 = vsel %vm141, 1, 0
    %v158 = vsel %vm142, 1, 0
    %v159 = vsel %vm143, 1, 0
    %v160 = vcvt.s32.f32 %v144
    %v161 = vcvt.s32.f32 %v145
    %v162 = vcvt.s32.f32 %v146
    %v163 = vcvt.s32.f32 %v147
    %v164 = vcvt.s32.f32 %v148
    %v165 = vcvt.s32.f32 %v149
    %v166 = vcvt.s32.f32 %v150
    %v167 = vcvt.s32.f32 %v151
    %v168 = vcvt.s32.f32 %v152
    %v169 = vcvt.s32.f32 %v153
    %v170 = vcvt.s32.f32 %v154
    %v171 = vcvt.s32.f32 %v155
    %v172 = vcvt.s32.f32 %v156
    %v173 = vcvt.s32.f32 %v157
    %v174 = vcvt.s32.f32 %v158
    %v175 = vcvt.s32.f32 %v159
    %176 = vmatprep.subr.mxu0 0.0
    %v177 = vand.u32 %v175, 4294901760
    %178 = vmatpush1.msra.mxu0 %v177
    %179 = vmatprep.subr.mxu0 0.0
    %v180 = vand.u32 %v174, 4294901760
    %181 = vmatpush1.msra.mxu0 %v180
    %182 = vmatprep.subr.mxu0 0.0
    %v183 = vand.u32 %v173, 4294901760
    %184 = vmatpush1.msra.mxu0 %v183
    %185 = vmatprep.subr.mxu0 0.0
    %v186 = vand.u32 %v172, 4294901760
    %187 = vmatpush1.msra.mxu0 %v186
    %188 = vmatprep.subr.mxu0 0.0
    %v189 = vand.u32 %v171, 4294901760
    %190 = vmatpush1.msra.mxu0 %v189
    %191 = vmatprep.subr.mxu0 0.0
    %v192 = vand.u32 %v170, 4294901760
    %193 = vmatpush1.msra.mxu0 %v192
    %194 = vmatprep.subr.mxu0 0.0
    %v195 = vand.u32 %v169, 4294901760
    %196 = vmatpush1.msra.mxu0 %v195
    %197 = vmatprep.subr.mxu0 0.0
    %v198 = vand.u32 %v168, 4294901760
    %199 = vmatpush1.msra.mxu0 %v198
    %200 = vmatprep.subr.mxu0 0.0
    %v201 = vand.u32 %v167, 4294901760
    %202 = vmatpush1.msra.mxu0 %v201
    %203 = vmatprep.subr.mxu0 0.0
    %v204 = vand.u32 %v166, 4294901760
    %205 = vmatpush1.msra.mxu0 %v204
    %206 = vmatprep.subr.mxu0 0.0
    %v207 = vand.u32 %v165, 4294901760
    %208 = vmatpush1.msra.mxu0 %v207
    %209 = vmatprep.subr.mxu0 0.0
    %v210 = vand.u32 %v164, 4294901760
    %211 = vmatpush1.msra.mxu0 %v210
    %212 = vmatprep.subr.mxu0 0.0
    %v213 = vand.u32 %v163, 4294901760
    %214 = vmatpush1.msra.mxu0 %v213
    %215 = vmatprep.subr.mxu0 0.0
    %v216 = vand.u32 %v162, 4294901760
    %217 = vmatpush1.msra.mxu0 %v216
    %218 = vmatprep.subr.mxu0 0.0
    %v219 = vand.u32 %v161, 4294901760
    %220 = vmatpush1.msra.mxu0 %v219
    %221 = vmatprep.subr.mxu0 0.0
    %v222 = vand.u32 %v160, 4294901760
    %223 = vmatpush1.msra.mxu0 %v222
    %224 = vmatprep.subr.mxu0 0.0
    %225 = vmatpush2.msra.mxu0 0.0
    %226 = vmatprep.subr.mxu0 0.0
    %227 = vmatpush2.msra.mxu0 0.0
    %228 = vmatprep.subr.mxu0 0.0
    %229 = vmatpush2.msra.mxu0 0.0
    %230 = vmatprep.subr.mxu0 0.0
    %231 = vmatpush2.msra.mxu0 0.0
    %232 = vmatprep.subr.mxu0 0.0
    %233 = vmatpush2.msra.mxu0 0.0
    %234 = vmatprep.subr.mxu0 0.0
    %235 = vmatpush2.msra.mxu0 0.0
    %236 = vmatprep.subr.mxu0 0.0
    %237 = vmatpush2.msra.mxu0 0.0
    %238 = vmatprep.subr.mxu0 0.0
    %239 = vmatpush2.msra.mxu0 0.0
    %240 = vmatprep.subr.mxu0 0.0
    %241 = vmatpush2.msra.mxu0 0.0
    %242 = vmatprep.subr.mxu0 0.0
    %243 = vmatpush2.msra.mxu0 0.0
    %244 = vmatprep.subr.mxu0 0.0
    %245 = vmatpush2.msra.mxu0 0.0
    %246 = vmatprep.subr.mxu0 0.0
    %247 = vmatpush2.msra.mxu0 0.0
    %248 = vmatprep.subr.mxu0 0.0
    %249 = vmatpush2.msra.mxu0 0.0
    %250 = vmatprep.subr.mxu0 0.0
    %251 = vmatpush2.msra.mxu0 0.0
    %252 = vmatprep.subr.mxu0 0.0
    %253 = vmatpush2.msra.mxu0 0.0
    %254 = vmatprep.subr.mxu0 0.0
    %255 = vmatpush2.msra.mxu0 0.0
    %256 = vmatprep.mubr.f32.mxu0 0.0
    %v257 = vand.u32 %v75, 4294901760
    %v258 = vsub.f32 %v75, %v257
    %v259 = vand.u32 %v258, 4294901760
    %v260 = vsub.f32 %v258, %v259
    %v261 = vand.u32 %v260, 4294901760
    %262 = vmatmul.mubr.f32.gmra.mxu0 %v261
    %v263 = vpop.f32.mrf.mxu0
    %v264 = vadd.f32 0.0, %v263
    %v265 = vpop.f32.mrf.mxu0
    %266 = vdwg.mxu0
    %267 = vmatprep.subr.mxu0 0.0
    %v268 = vand.u32 %v175, 4294901760
    %v269 = vsub.f32 %v175, %v268
    %v270 = vand.u32 %v269, 4294901760
    %v271 = vsub.f32 %v269, %v270
    %v272 = vand.u32 %v271, 4294901760
    %273 = vmatpush1.msra.mxu0 %v272
    %274 = vmatprep.subr.mxu0 0.0
    %v275 = vand.u32 %v174, 4294901760
    %v276 = vsub.f32 %v174, %v275
    %v277 = vand.u32 %v276, 4294901760
    %v278 = vsub.f32 %v276, %v277
    %v279 = vand.u32 %v278, 4294901760
    %280 = vmatpush1.msra.mxu0 %v279
    %281 = vmatprep.subr.mxu0 0.0
    %v282 = vand.u32 %v173, 4294901760
    %v283 = vsub.f32 %v173, %v282
    %v284 = vand.u32 %v283, 4294901760
    %v285 = vsub.f32 %v283, %v284
    %v286 = vand.u32 %v285, 4294901760
    %287 = vmatpush1.msra.mxu0 %v286
    %288 = vmatprep.subr.mxu0 0.0
    %v289 = vand.u32 %v172, 4294901760
    %v290 = vsub.f32 %v172, %v289
    %v291 = vand.u32 %v290, 4294901760
    %v292 = vsub.f32 %v290, %v291
    %v293 = vand.u32 %v292, 4294901760
    %294 = vmatpush1.msra.mxu0 %v293
    %295 = vmatprep.subr.mxu0 0.0
    %v296 = vand.u32 %v171, 4294901760
    %v297 = vsub.f32 %v171, %v296
    %v298 = vand.u32 %v297, 4294901760
    %v299 = vsub.f32 %v297, %v298
    %v300 = vand.u32 %v299, 4294901760
    %301 = vmatpush1.msra.mxu0 %v300
    %302 = vmatprep.subr.mxu0 0.0
    %v303 = vand.u32 %v170, 4294901760
    %v304 = vsub.f32 %v170, %v303
    %v305 = vand.u32 %v304, 4294901760
    %v306 = vsub.f32 %v304, %v305
    %v307 = vand.u32 %v306, 4294901760
    %308 = vmatpush1.msra.mxu0 %v307
    %309 = vmatprep.subr.mxu0 0.0
    %v310 = vand.u32 %v169, 4294901760
    %v311 = vsub.f32 %v169, %v310
    %v312 = vand.u32 %v311, 4294901760
    %v313 = vsub.f32 %v311, %v312
    %v314 = vand.u32 %v313, 4294901760
    %315 = vmatpush1.msra.mxu0 %v314
    %316 = vmatprep.subr.mxu0 0.0
    %v317 = vand.u32 %v168, 4294901760
    %v318 = vsub.f32 %v168, %v317
    %v319 = vand.u32 %v318, 4294901760
    %v320 = vsub.f32 %v318, %v319
    %v321 = vand.u32 %v320, 4294901760
    %322 = vmatpush1.msra.mxu0 %v321
    %323 = vmatprep.subr.mxu0 0.0
    %v324 = vand.u32 %v167, 4294901760
    %v325 = vsub.f32 %v167, %v324
    %v326 = vand.u32 %v325, 4294901760
    %v327 = vsub.f32 %v325, %v326
    %v328 = vand.u32 %v327, 4294901760
    %329 = vmatpush1.msra.mxu0 %v328
    %330 = vmatprep.subr.mxu0 0.0
    %v331 = vand.u32 %v166, 4294901760
    %v332 = vsub.f32 %v166, %v331
    %v333 = vand.u32 %v332, 4294901760
    %v334 = vsub.f32 %v332, %v333
    %v335 = vand.u32 %v334, 4294901760
    %336 = vmatpush1.msra.mxu0 %v335
    %337 = vmatprep.subr.mxu0 0.0
    %v338 = vand.u32 %v165, 4294901760
    %v339 = vsub.f32 %v165, %v338
    %v340 = vand.u32 %v339, 4294901760
    %v341 = vsub.f32 %v339, %v340
    %v342 = vand.u32 %v341, 4294901760
    %343 = vmatpush1.msra.mxu0 %v342
    %344 = vmatprep.subr.mxu0 0.0
    %v345 = vand.u32 %v164, 4294901760
    %v346 = vsub.f32 %v164, %v345
    %v347 = vand.u32 %v346, 4294901760
    %v348 = vsub.f32 %v346, %v347
    %v349 = vand.u32 %v348, 4294901760
    %350 = vmatpush1.msra.mxu0 %v349
    %351 = vmatprep.subr.mxu0 0.0
    %v352 = vand.u32 %v163, 4294901760
    %v353 = vsub.f32 %v163, %v352
    %v354 = vand.u32 %v353, 4294901760
    %v355 = vsub.f32 %v353, %v354
    %v356 = vand.u32 %v355, 4294901760
    %357 = vmatpush1.msra.mxu0 %v356
    %358 = vmatprep.subr.mxu0 0.0
    %v359 = vand.u32 %v162, 4294901760
    %v360 = vsub.f32 %v162, %v359
    %v361 = vand.u32 %v360, 4294901760
    %v362 = vsub.f32 %v360, %v361
    %v363 = vand.u32 %v362, 4294901760
    %364 = vmatpush1.msra.mxu0 %v363
    %365 = vmatprep.subr.mxu0 0.0
    %v366 = vand.u32 %v161, 4294901760
    %v367 = vsub.f32 %v161, %v366
    %v368 = vand.u32 %v367, 4294901760
    %v369 = vsub.f32 %v367, %v368
    %v370 = vand.u32 %v369, 4294901760
    %371 = vmatpush1.msra.mxu0 %v370
    %372 = vmatprep.subr.mxu0 0.0
    %v373 = vand.u32 %v160, 4294901760
    %v374 = vsub.f32 %v160, %v373
    %v375 = vand.u32 %v374, 4294901760
    %v376 = vsub.f32 %v374, %v375
    %v377 = vand.u32 %v376, 4294901760
    %378 = vmatpush1.msra.mxu0 %v377
    %379 = vmatprep.subr.mxu0 0.0
    %380 = vmatpush2.msra.mxu0 0.0
    %381 = vmatprep.subr.mxu0 0.0
    %382 = vmatpush2.msra.mxu0 0.0
    %383 = vmatprep.subr.mxu0 0.0
    %384 = vmatpush2.msra.mxu0 0.0
    %385 = vmatprep.subr.mxu0 0.0
    %386 = vmatpush2.msra.mxu0 0.0
    %387 = vmatprep.subr.mxu0 0.0
    %388 = vmatpush2.msra.mxu0 0.0
    %389 = vmatprep.subr.mxu0 0.0
    %390 = vmatpush2.msra.mxu0 0.0
    %391 = vmatprep.subr.mxu0 0.0
    %392 = vmatpush2.msra.mxu0 0.0
    %393 = vmatprep.subr.mxu0 0.0
    %394 = vmatpush2.msra.mxu0 0.0
    %395 = vmatprep.subr.mxu0 0.0
    %396 = vmatpush2.msra.mxu0 0.0
    %397 = vmatprep.subr.mxu0 0.0
    %398 = vmatpush2.msra.mxu0 0.0
    %399 = vmatprep.subr.mxu0 0.0
    %400 = vmatpush2.msra.mxu0 0.0
    %401 = vmatprep.subr.mxu0 0.0
    %402 = vmatpush2.msra.mxu0 0.0
    %403 = vmatprep.subr.mxu0 0.0
    %404 = vmatpush2.msra.mxu0 0.0
    %405 = vmatprep.subr.mxu0 0.0
    %406 = vmatpush2.msra.mxu0 0.0
    %407 = vmatprep.subr.mxu0 0.0
    %408 = vmatpush2.msra.mxu0 0.0
    %409 = vmatprep.subr.mxu0 0.0
    %410 = vmatpush2.msra.mxu0 0.0
    %411 = vmatprep.mubr.f32.mxu0 0.0
    %v412 = vand.u32 %v75, 4294901760
    %413 = vmatmul.mubr.f32.gmra.mxu0 %v412
    %v414 = vpop.f32.mrf.mxu0
    %v415 = vadd.f32 %v264, %v414
    %v416 = vpop.f32.mrf.mxu0
    %417 = vdwg.mxu0
    %418 = vmatprep.subr.mxu0 0.0
    %v419 = vand.u32 %v175, 4294901760
    %v420 = vsub.f32 %v175, %v419
    %421 = vmatpush1.msra.mxu0 %v420
    %422 = vmatprep.subr.mxu0 0.0
    %v423 = vand.u32 %v174, 4294901760
    %v424 = vsub.f32 %v174, %v423
    %425 = vmatpush1.msra.mxu0 %v424
    %426 = vmatprep.subr.mxu0 0.0
    %v427 = vand.u32 %v173, 4294901760
    %v428 = vsub.f32 %v173, %v427
    %429 = vmatpush1.msra.mxu0 %v428
    %430 = vmatprep.subr.mxu0 0.0
    %v431 = vand.u32 %v172, 4294901760
    %v432 = vsub.f32 %v172, %v431
    %433 = vmatpush1.msra.mxu0 %v432
    %434 = vmatprep.subr.mxu0 0.0
    %v435 = vand.u32 %v171, 4294901760
    %v436 = vsub.f32 %v171, %v435
    %437 = vmatpush1.msra.mxu0 %v436
    %438 = vmatprep.subr.mxu0 0.0
    %v439 = vand.u32 %v170, 4294901760
    %v440 = vsub.f32 %v170, %v439
    %441 = vmatpush1.msra.mxu0 %v440
    %442 = vmatprep.subr.mxu0 0.0
    %v443 = vand.u32 %v169, 4294901760
    %v444 = vsub.f32 %v169, %v443
    %445 = vmatpush1.msra.mxu0 %v444
    %446 = vmatprep.subr.mxu0 0.0
    %v447 = vand.u32 %v168, 4294901760
    %v448 = vsub.f32 %v168, %v447
    %449 = vmatpush1.msra.mxu0 %v448
    %450 = vmatprep.subr.mxu0 0.0
    %v451 = vand.u32 %v167, 4294901760
    %v452 = vsub.f32 %v167, %v451
    %453 = vmatpush1.msra.mxu0 %v452
    %454 = vmatprep.subr.mxu0 0.0
    %v455 = vand.u32 %v166, 4294901760
    %v456 = vsub.f32 %v166, %v455
    %457 = vmatpush1.msra.mxu0 %v456
    %458 = vmatprep.subr.mxu0 0.0
    %v459 = vand.u32 %v165, 4294901760
    %v460 = vsub.f32 %v165, %v459
    %461 = vmatpush1.msra.mxu0 %v460
    %462 = vmatprep.subr.mxu0 0.0
    %v463 = vand.u32 %v164, 4294901760
    %v464 = vsub.f32 %v164, %v463
    %465 = vmatpush1.msra.mxu0 %v464
    %466 = vmatprep.subr.mxu0 0.0
    %v467 = vand.u32 %v163, 4294901760
    %v468 = vsub.f32 %v163, %v467
    %469 = vmatpush1.msra.mxu0 %v468
    %470 = vmatprep.subr.mxu0 0.0
    %v471 = vand.u32 %v162, 4294901760
    %v472 = vsub.f32 %v162, %v471
    %473 = vmatpush1.msra.mxu0 %v472
    %474 = vmatprep.subr.mxu0 0.0
    %v475 = vand.u32 %v161, 4294901760
    %v476 = vsub.f32 %v161, %v475
    %477 = vmatpush1.msra.mxu0 %v476
    %478 = vmatprep.subr.mxu0 0.0
    %v479 = vand.u32 %v160, 4294901760
    %v480 = vsub.f32 %v160, %v479
    %481 = vmatpush1.msra.mxu0 %v480
    %482 = vmatprep.subr.mxu0 0.0
    %483 = vmatpush2.msra.mxu0 0.0
    %484 = vmatprep.subr.mxu0 0.0
    %485 = vmatpush2.msra.mxu0 0.0
    %486 = vmatprep.subr.mxu0 0.0
    %487 = vmatpush2.msra.mxu0 0.0
    %488 = vmatprep.subr.mxu0 0.0
    %489 = vmatpush2.msra.mxu0 0.0
    %490 = vmatprep.subr.mxu0 0.0
    %491 = vmatpush2.msra.mxu0 0.0
    %492 = vmatprep.subr.mxu0 0.0
    %493 = vmatpush2.msra.mxu0 0.0
    %494 = vmatprep.subr.mxu0 0.0
    %495 = vmatpush2.msra.mxu0 0.0
    %496 = vmatprep.subr.mxu0 0.0
    %497 = vmatpush2.msra.mxu0 0.0
    %498 = vmatprep.subr.mxu0 0.0
    %499 = vmatpush2.msra.mxu0 0.0
    %500 = vmatprep.subr.mxu0 0.0
    %501 = vmatpush2.msra.mxu0 0.0
    %502 = vmatprep.subr.mxu0 0.0
    %503 = vmatpush2.msra.mxu0 0.0
    %504 = vmatprep.subr.mxu0 0.0
    %505 = vmatpush2.msra.mxu0 0.0
    %506 = vmatprep.subr.mxu0 0.0
    %507 = vmatpush2.msra.mxu0 0.0
    %508 = vmatprep.subr.mxu0 0.0
    %509 = vmatpush2.msra.mxu0 0.0
    %510 = vmatprep.subr.mxu0 0.0
    %511 = vmatpush2.msra.mxu0 0.0
    %512 = vmatprep.subr.mxu0 0.0
    %513 = vmatpush2.msra.mxu0 0.0
    %514 = vmatprep.mubr.f32.mxu0 0.0
    %v515 = vand.u32 %v75, 4294901760
    %v516 = vsub.f32 %v75, %v515
    %517 = vmatmul.mubr.f32.gmra.mxu0 %v516
    %v518 = vpop.f32.mrf.mxu0
    %v519 = vadd.f32 %v415, %v518
    %v520 = vpop.f32.mrf.mxu0
    %521 = vdwg.mxu0
    %522 = vmatprep.subr.mxu0 0.0
    %v523 = vand.u32 %v175, 4294901760
    %524 = vmatpush1.msra.mxu0 %v523
    %525 = vmatprep.subr.mxu0 0.0
    %v526 = vand.u32 %v174, 4294901760
    %527 = vmatpush1.msra.mxu0 %v526
    %528 = vmatprep.subr.mxu0 0.0
    %v529 = vand.u32 %v173, 4294901760
    %530 = vmatpush1.msra.mxu0 %v529
    %531 = vmatprep.subr.mxu0 0.0
    %v532 = vand.u32 %v172, 4294901760
    %533 = vmatpush1.msra.mxu0 %v532
    %534 = vmatprep.subr.mxu0 0.0
    %v535 = vand.u32 %v171, 4294901760
    %536 = vmatpush1.msra.mxu0 %v535
    %537 = vmatprep.subr.mxu0 0.0
    %v538 = vand.u32 %v170, 4294901760
    %539 = vmatpush1.msra.mxu0 %v538
    %540 = vmatprep.subr.mxu0 0.0
    %v541 = vand.u32 %v169, 4294901760
    %542 = vmatpush1.msra.mxu0 %v541
    %543 = vmatprep.subr.mxu0 0.0
    %v544 = vand.u32 %v168, 4294901760
    %545 = vmatpush1.msra.mxu0 %v544
    %546 = vmatprep.subr.mxu0 0.0
    %v547 = vand.u32 %v167, 4294901760
    %548 = vmatpush1.msra.mxu0 %v547
    %549 = vmatprep.subr.mxu0 0.0
    %v550 = vand.u32 %v166, 4294901760
    %551 = vmatpush1.msra.mxu0 %v550
    %552 = vmatprep.subr.mxu0 0.0
    %v553 = vand.u32 %v165, 4294901760
    %554 = vmatpush1.msra.mxu0 %v553
    %555 = vmatprep.subr.mxu0 0.0
    %v556 = vand.u32 %v164, 4294901760
    %557 = vmatpush1.msra.mxu0 %v556
    %558 = vmatprep.subr.mxu0 0.0
    %v559 = vand.u32 %v163, 4294901760
    %560 = vmatpush1.msra.mxu0 %v559
    %561 = vmatprep.subr.mxu0 0.0
    %v562 = vand.u32 %v162, 4294901760
    %563 = vmatpush1.msra.mxu0 %v562
    %564 = vmatprep.subr.mxu0 0.0
    %v565 = vand.u32 %v161, 4294901760
    %566 = vmatpush1.msra.mxu0 %v565
    %567 = vmatprep.subr.mxu0 0.0
    %v568 = vand.u32 %v160, 4294901760
    %569 = vmatpush1.msra.mxu0 %v568
    %570 = vmatprep.subr.mxu0 0.0
    %571 = vmatpush2.msra.mxu0 0.0
    %572 = vmatprep.subr.mxu0 0.0
    %573 = vmatpush2.msra.mxu0 0.0
    %574 = vmatprep.subr.mxu0 0.0
    %575 = vmatpush2.msra.mxu0 0.0
    %576 = vmatprep.subr.mxu0 0.0
    %577 = vmatpush2.msra.mxu0 0.0
    %578 = vmatprep.subr.mxu0 0.0
    %579 = vmatpush2.msra.mxu0 0.0
    %580 = vmatprep.subr.mxu0 0.0
    %581 = vmatpush2.msra.mxu0 0.0
    %582 = vmatprep.subr.mxu0 0.0
    %583 = vmatpush2.msra.mxu0 0.0
    %584 = vmatprep.subr.mxu0 0.0
    %585 = vmatpush2.msra.mxu0 0.0
    %586 = vmatprep.subr.mxu0 0.0
    %587 = vmatpush2.msra.mxu0 0.0
    %588 = vmatprep.subr.mxu0 0.0
    %589 = vmatpush2.msra.mxu0 0.0
    %590 = vmatprep.subr.mxu0 0.0
    %591 = vmatpush2.msra.mxu0 0.0
    %592 = vmatprep.subr.mxu0 0.0
    %593 = vmatpush2.msra.mxu0 0.0
    %594 = vmatprep.subr.mxu0 0.0
    %595 = vmatpush2.msra.mxu0 0.0
    %596 = vmatprep.subr.mxu0 0.0
    %597 = vmatpush2.msra.mxu0 0.0
    %598 = vmatprep.subr.mxu0 0.0
    %599 = vmatpush2.msra.mxu0 0.0
    %600 = vmatprep.subr.mxu0 0.0
    %601 = vmatpush2.msra.mxu0 0.0
    %602 = vmatprep.mubr.f32.mxu0 0.0
    %v603 = vand.u32 %v75, 4294901760
    %v604 = vsub.f32 %v75, %v603
    %v605 = vand.u32 %v604, 4294901760
    %606 = vmatmul.mubr.f32.gmra.mxu0 %v605
    %v607 = vpop.f32.mrf.mxu0
    %v608 = vadd.f32 %v519, %v607
    %v609 = vpop.f32.mrf.mxu0
    %610 = vdwg.mxu0
    %611 = vmatprep.subr.mxu0 0.0
    %v612 = vand.u32 %v175, 4294901760
    %v613 = vsub.f32 %v175, %v612
    %v614 = vand.u32 %v613, 4294901760
    %615 = vmatpush1.msra.mxu0 %v614
    %616 = vmatprep.subr.mxu0 0.0
    %v617 = vand.u32 %v174, 4294901760
    %v618 = vsub.f32 %v174, %v617
    %v619 = vand.u32 %v618, 4294901760
    %620 = vmatpush1.msra.mxu0 %v619
    %621 = vmatprep.subr.mxu0 0.0
    %v622 = vand.u32 %v173, 4294901760
    %v623 = vsub.f32 %v173, %v622
    %v624 = vand.u32 %v623, 4294901760
    %625 = vmatpush1.msra.mxu0 %v624
    %626 = vmatprep.subr.mxu0 0.0
    %v627 = vand.u32 %v172, 4294901760
    %v628 = vsub.f32 %v172, %v627
    %v629 = vand.u32 %v628, 4294901760
    %630 = vmatpush1.msra.mxu0 %v629
    %631 = vmatprep.subr.mxu0 0.0
    %v632 = vand.u32 %v171, 4294901760
    %v633 = vsub.f32 %v171, %v632
    %v634 = vand.u32 %v633, 4294901760
    %635 = vmatpush1.msra.mxu0 %v634
    %636 = vmatprep.subr.mxu0 0.0
    %v637 = vand.u32 %v170, 4294901760
    %v638 = vsub.f32 %v170, %v637
    %v639 = vand.u32 %v638, 4294901760
    %640 = vmatpush1.msra.mxu0 %v639
    %641 = vmatprep.subr.mxu0 0.0
    %v642 = vand.u32 %v169, 4294901760
    %v643 = vsub.f32 %v169, %v642
    %v644 = vand.u32 %v643, 4294901760
    %645 = vmatpush1.msra.mxu0 %v644
    %646 = vmatprep.subr.mxu0 0.0
    %v647 = vand.u32 %v168, 4294901760
    %v648 = vsub.f32 %v168, %v647
    %v649 = vand.u32 %v648, 4294901760
    %650 = vmatpush1.msra.mxu0 %v649
    %651 = vmatprep.subr.mxu0 0.0
    %v652 = vand.u32 %v167, 4294901760
    %v653 = vsub.f32 %v167, %v652
    %v654 = vand.u32 %v653, 4294901760
    %655 = vmatpush1.msra.mxu0 %v654
    %656 = vmatprep.subr.mxu0 0.0
    %v657 = vand.u32 %v166, 4294901760
    %v658 = vsub.f32 %v166, %v657
    %v659 = vand.u32 %v658, 4294901760
    %660 = vmatpush1.msra.mxu0 %v659
    %661 = vmatprep.subr.mxu0 0.0
    %v662 = vand.u32 %v165, 4294901760
    %v663 = vsub.f32 %v165, %v662
    %v664 = vand.u32 %v663, 4294901760
    %665 = vmatpush1.msra.mxu0 %v664
    %666 = vmatprep.subr.mxu0 0.0
    %v667 = vand.u32 %v164, 4294901760
    %v668 = vsub.f32 %v164, %v667
    %v669 = vand.u32 %v668, 4294901760
    %670 = vmatpush1.msra.mxu0 %v669
    %671 = vmatprep.subr.mxu0 0.0
    %v672 = vand.u32 %v163, 4294901760
    %v673 = vsub.f32 %v163, %v672
    %v674 = vand.u32 %v673, 4294901760
    %675 = vmatpush1.msra.mxu0 %v674
    %676 = vmatprep.subr.mxu0 0.0
    %v677 = vand.u32 %v162, 4294901760
    %v678 = vsub.f32 %v162, %v677
    %v679 = vand.u32 %v678, 4294901760
    %680 = vmatpush1.msra.mxu0 %v679
    %681 = vmatprep.subr.mxu0 0.0
    %v682 = vand.u32 %v161, 4294901760
    %v683 = vsub.f32 %v161, %v682
    %v684 = vand.u32 %v683, 4294901760
    %685 = vmatpush1.msra.mxu0 %v684
    %686 = vmatprep.subr.mxu0 0.0
    %v687 = vand.u32 %v160, 4294901760
    %v688 = vsub.f32 %v160, %v687
    %v689 = vand.u32 %v688, 4294901760
    %690 = vmatpush1.msra.mxu0 %v689
    %691 = vmatprep.subr.mxu0 0.0
    %692 = vmatpush2.msra.mxu0 0.0
    %693 = vmatprep.subr.mxu0 0.0
    %694 = vmatpush2.msra.mxu0 0.0
    %695 = vmatprep.subr.mxu0 0.0
    %696 = vmatpush2.msra.mxu0 0.0
    %697 = vmatprep.subr.mxu0 0.0
    %698 = vmatpush2.msra.mxu0 0.0
    %699 = vmatprep.subr.mxu0 0.0
    %700 = vmatpush2.msra.mxu0 0.0
    %701 = vmatprep.subr.mxu0 0.0
    %702 = vmatpush2.msra.mxu0 0.0
    %703 = vmatprep.subr.mxu0 0.0
    %704 = vmatpush2.msra.mxu0 0.0
    %705 = vmatprep.subr.mxu0 0.0
    %706 = vmatpush2.msra.mxu0 0.0
    %707 = vmatprep.subr.mxu0 0.0
    %708 = vmatpush2.msra.mxu0 0.0
    %709 = vmatprep.subr.mxu0 0.0
    %710 = vmatpush2.msra.mxu0 0.0
    %711 = vmatprep.subr.mxu0 0.0
    %712 = vmatpush2.msra.mxu0 0.0
    %713 = vmatprep.subr.mxu0 0.0
    %714 = vmatpush2.msra.mxu0 0.0
    %715 = vmatprep.subr.mxu0 0.0
    %716 = vmatpush2.msra.mxu0 0.0
    %717 = vmatprep.subr.mxu0 0.0
    %718 = vmatpush2.msra.mxu0 0.0
    %719 = vmatprep.subr.mxu0 0.0
    %720 = vmatpush2.msra.mxu0 0.0
    %721 = vmatprep.subr.mxu0 0.0
    %722 = vmatpush2.msra.mxu0 0.0
    %723 = vmatprep.mubr.f32.mxu0 0.0
    %v724 = vand.u32 %v75, 4294901760
    %725 = vmatmul.mubr.f32.gmra.mxu0 %v724
    %v726 = vpop.f32.mrf.mxu0
    %v727 = vadd.f32 %v608, %v726
    %v728 = vpop.f32.mrf.mxu0
    %729 = vdwg.mxu0
    %730 = vmatprep.subr.mxu0 0.0
    %v731 = vand.u32 %v175, 4294901760
    %732 = vmatpush1.msra.mxu0 %v731
    %733 = vmatprep.subr.mxu0 0.0
    %v734 = vand.u32 %v174, 4294901760
    %735 = vmatpush1.msra.mxu0 %v734
    %736 = vmatprep.subr.mxu0 0.0
    %v737 = vand.u32 %v173, 4294901760
    %738 = vmatpush1.msra.mxu0 %v737
    %739 = vmatprep.subr.mxu0 0.0
    %v740 = vand.u32 %v172, 4294901760
    %741 = vmatpush1.msra.mxu0 %v740
    %742 = vmatprep.subr.mxu0 0.0
    %v743 = vand.u32 %v171, 4294901760
    %744 = vmatpush1.msra.mxu0 %v743
    %745 = vmatprep.subr.mxu0 0.0
    %v746 = vand.u32 %v170, 4294901760
    %747 = vmatpush1.msra.mxu0 %v746
    %748 = vmatprep.subr.mxu0 0.0
    %v749 = vand.u32 %v169, 4294901760
    %750 = vmatpush1.msra.mxu0 %v749
    %751 = vmatprep.subr.mxu0 0.0
    %v752 = vand.u32 %v168, 4294901760
    %753 = vmatpush1.msra.mxu0 %v752
    %754 = vmatprep.subr.mxu0 0.0
    %v755 = vand.u32 %v167, 4294901760
    %756 = vmatpush1.msra.mxu0 %v755
    %757 = vmatprep.subr.mxu0 0.0
    %v758 = vand.u32 %v166, 4294901760
    %759 = vmatpush1.msra.mxu0 %v758
    %760 = vmatprep.subr.mxu0 0.0
    %v761 = vand.u32 %v165, 4294901760
    %762 = vmatpush1.msra.mxu0 %v761
    %763 = vmatprep.subr.mxu0 0.0
    %v764 = vand.u32 %v164, 4294901760
    %765 = vmatpush1.msra.mxu0 %v764
    %766 = vmatprep.subr.mxu0 0.0
    %v767 = vand.u32 %v163, 4294901760
    %768 = vmatpush1.msra.mxu0 %v767
    %769 = vmatprep.subr.mxu0 0.0
    %v770 = vand.u32 %v162, 4294901760
    %771 = vmatpush1.msra.mxu0 %v770
    %772 = vmatprep.subr.mxu0 0.0
    %v773 = vand.u32 %v161, 4294901760
    %774 = vmatpush1.msra.mxu0 %v773
    %775 = vmatprep.subr.mxu0 0.0
    %v776 = vand.u32 %v160, 4294901760
    %777 = vmatpush1.msra.mxu0 %v776
    %778 = vmatprep.subr.mxu0 0.0
    %779 = vmatpush2.msra.mxu0 0.0
    %780 = vmatprep.subr.mxu0 0.0
    %781 = vmatpush2.msra.mxu0 0.0
    %782 = vmatprep.subr.mxu0 0.0
    %783 = vmatpush2.msra.mxu0 0.0
    %784 = vmatprep.subr.mxu0 0.0
    %785 = vmatpush2.msra.mxu0 0.0
    %786 = vmatprep.subr.mxu0 0.0
    %787 = vmatpush2.msra.mxu0 0.0
    %788 = vmatprep.subr.mxu0 0.0
    %789 = vmatpush2.msra.mxu0 0.0
    %790 = vmatprep.subr.mxu0 0.0
    %791 = vmatpush2.msra.mxu0 0.0
    %792 = vmatprep.subr.mxu0 0.0
    %793 = vmatpush2.msra.mxu0 0.0
    %794 = vmatprep.subr.mxu0 0.0
    %795 = vmatpush2.msra.mxu0 0.0
    %796 = vmatprep.subr.mxu0 0.0
    %797 = vmatpush2.msra.mxu0 0.0
    %798 = vmatprep.subr.mxu0 0.0
    %799 = vmatpush2.msra.mxu0 0.0
    %800 = vmatprep.subr.mxu0 0.0
    %801 = vmatpush2.msra.mxu0 0.0
    %802 = vmatprep.subr.mxu0 0.0
    %803 = vmatpush2.msra.mxu0 0.0
    %804 = vmatprep.subr.mxu0 0.0
    %805 = vmatpush2.msra.mxu0 0.0
    %806 = vmatprep.subr.mxu0 0.0
    %807 = vmatpush2.msra.mxu0 0.0
    %808 = vmatprep.subr.mxu0 0.0
    %809 = vmatpush2.msra.mxu0 0.0
    %810 = vmatprep.mubr.f32.mxu0 0.0
    %v811 = vand.u32 %v75, 4294901760
    %812 = vmatmul.mubr.f32.gmra.mxu0 %v811
    %v813 = vpop.f32.mrf.mxu0
    %v814 = vadd.f32 %v727, %v813
    %v815 = vpop.f32.mrf.mxu0
    %816 = vdwg.mxu0
    %v817 = vmul.u32 %v77, 32
    %vm818 = vcmp.ge.s32.totalorder %v39, %v817
    %v819 = vadd.s32 %v77, 1
    %v820 = vmul.u32 %v819, 32
    %vm821 = vcmp.lt.s32.totalorder %v39, %v820
    %vm822 = vmand %vm818, %vm821
    %v823 = vsel %vm822, 1, 0
    %v824 = vcvt.s32.f32 %v823
    %v825 = vcvt.s32.f32 %v37
    %vm826 = vcmask 31744
    %v828 = vsel %vm826, %v825, 0
    %vm830 = vcmask 1043456
    %v832 = vsel %vm830, %v824, 0
    %834 = vmatprep.subr.mxu0 0.0
    %835 = vmatpush1.msra.mxu0 0.0
    %836 = vmatprep.subr.mxu0 0.0
    %837 = vmatpush1.msra.mxu0 0.0
    %838 = vmatprep.subr.mxu0 0.0
    %839 = vmatpush1.msra.mxu0 0.0
    %840 = vmatprep.subr.mxu0 0.0
    %841 = vmatpush1.msra.mxu0 0.0
    %842 = vmatprep.subr.mxu0 0.0
    %843 = vmatpush1.msra.mxu0 0.0
    %844 = vmatprep.subr.mxu0 0.0
    %845 = vmatpush1.msra.mxu0 0.0
    %846 = vmatprep.subr.mxu0 0.0
    %847 = vmatpush1.msra.mxu0 0.0
    %848 = vmatprep.subr.mxu0 0.0
    %849 = vmatpush1.msra.mxu0 0.0
    %850 = vmatprep.subr.mxu0 0.0
    %851 = vmatpush1.msra.mxu0 0.0
    %852 = vmatprep.subr.mxu0 0.0
    %853 = vmatpush1.msra.mxu0 0.0
    %854 = vmatprep.subr.mxu0 0.0
    %855 = vmatpush1.msra.mxu0 0.0
    %856 = vmatprep.subr.mxu0 0.0
    %857 = vmatpush1.msra.mxu0 0.0
    %858 = vmatprep.subr.mxu0 0.0
    %859 = vmatpush1.msra.mxu0 0.0
    %860 = vmatprep.subr.mxu0 0.0
    %861 = vmatpush1.msra.mxu0 0.0
    %862 = vmatprep.subr.mxu0 0.0
    %863 = vmatpush1.msra.mxu0 0.0
    %864 = vmatprep.subr.mxu0 0.0
    %v865 = vand.u32 %v832, 4294901760
    %866 = vmatpush1.msra.mxu0 %v865
    %867 = vmatprep.subr.mxu0 0.0
    %868 = vmatpush2.msra.mxu0 0.0
    %869 = vmatprep.subr.mxu0 0.0
    %870 = vmatpush2.msra.mxu0 0.0
    %871 = vmatprep.subr.mxu0 0.0
    %872 = vmatpush2.msra.mxu0 0.0
    %873 = vmatprep.subr.mxu0 0.0
    %874 = vmatpush2.msra.mxu0 0.0
    %875 = vmatprep.subr.mxu0 0.0
    %876 = vmatpush2.msra.mxu0 0.0
    %877 = vmatprep.subr.mxu0 0.0
    %878 = vmatpush2.msra.mxu0 0.0
    %879 = vmatprep.subr.mxu0 0.0
    %880 = vmatpush2.msra.mxu0 0.0
    %881 = vmatprep.subr.mxu0 0.0
    %882 = vmatpush2.msra.mxu0 0.0
    %883 = vmatprep.subr.mxu0 0.0
    %884 = vmatpush2.msra.mxu0 0.0
    %885 = vmatprep.subr.mxu0 0.0
    %886 = vmatpush2.msra.mxu0 0.0
    %887 = vmatprep.subr.mxu0 0.0
    %888 = vmatpush2.msra.mxu0 0.0
    %889 = vmatprep.subr.mxu0 0.0
    %890 = vmatpush2.msra.mxu0 0.0
    %891 = vmatprep.subr.mxu0 0.0
    %892 = vmatpush2.msra.mxu0 0.0
    %893 = vmatprep.subr.mxu0 0.0
    %894 = vmatpush2.msra.mxu0 0.0
    %895 = vmatprep.subr.mxu0 0.0
    %896 = vmatpush2.msra.mxu0 0.0
    %897 = vmatprep.subr.mxu0 0.0
    %898 = vmatpush2.msra.mxu0 0.0
    %899 = vmatprep.mubr.f32.mxu0 0.0
    %v900 = vand.u32 %v828, 4294901760
    %v901 = vsub.f32 %v828, %v900
    %v902 = vand.u32 %v901, 4294901760
    %v903 = vsub.f32 %v901, %v902
    %v904 = vand.u32 %v903, 4294901760
    %905 = vmatmul.mubr.f32.gmra.mxu0 %v904
    %v906 = vpop.f32.mrf.mxu0
    %v907 = vadd.f32 0.0, %v906
    %v908 = vpop.f32.mrf.mxu0
    %909 = vdwg.mxu0
    %910 = vmatprep.subr.mxu0 0.0
    %911 = vmatpush1.msra.mxu0 0.0
    %912 = vmatprep.subr.mxu0 0.0
    %913 = vmatpush1.msra.mxu0 0.0
    %914 = vmatprep.subr.mxu0 0.0
    %915 = vmatpush1.msra.mxu0 0.0
    %916 = vmatprep.subr.mxu0 0.0
    %917 = vmatpush1.msra.mxu0 0.0
    %918 = vmatprep.subr.mxu0 0.0
    %919 = vmatpush1.msra.mxu0 0.0
    %920 = vmatprep.subr.mxu0 0.0
    %921 = vmatpush1.msra.mxu0 0.0
    %922 = vmatprep.subr.mxu0 0.0
    %923 = vmatpush1.msra.mxu0 0.0
    %924 = vmatprep.subr.mxu0 0.0
    %925 = vmatpush1.msra.mxu0 0.0
    %926 = vmatprep.subr.mxu0 0.0
    %927 = vmatpush1.msra.mxu0 0.0
    %928 = vmatprep.subr.mxu0 0.0
    %929 = vmatpush1.msra.mxu0 0.0
    %930 = vmatprep.subr.mxu0 0.0
    %931 = vmatpush1.msra.mxu0 0.0
    %932 = vmatprep.subr.mxu0 0.0
    %933 = vmatpush1.msra.mxu0 0.0
    %934 = vmatprep.subr.mxu0 0.0
    %935 = vmatpush1.msra.mxu0 0.0
    %936 = vmatprep.subr.mxu0 0.0
    %937 = vmatpush1.msra.mxu0 0.0
    %938 = vmatprep.subr.mxu0 0.0
    %939 = vmatpush1.msra.mxu0 0.0
    %940 = vmatprep.subr.mxu0 0.0
    %v941 = vand.u32 %v832, 4294901760
    %v942 = vsub.f32 %v832, %v941
    %v943 = vand.u32 %v942, 4294901760
    %v944 = vsub.f32 %v942, %v943
    %v945 = vand.u32 %v944, 4294901760
    %946 = vmatpush1.msra.mxu0 %v945
    %947 = vmatprep.subr.mxu0 0.0
    %948 = vmatpush2.msra.mxu0 0.0
    %949 = vmatprep.subr.mxu0 0.0
    %950 = vmatpush2.msra.mxu0 0.0
    %951 = vmatprep.subr.mxu0 0.0
    %952 = vmatpush2.msra.mxu0 0.0
    %953 = vmatprep.subr.mxu0 0.0
    %954 = vmatpush2.msra.mxu0 0.0
    %955 = vmatprep.subr.mxu0 0.0
    %956 = vmatpush2.msra.mxu0 0.0
    %957 = vmatprep.subr.mxu0 0.0
    %958 = vmatpush2.msra.mxu0 0.0
    %959 = vmatprep.subr.mxu0 0.0
    %960 = vmatpush2.msra.mxu0 0.0
    %961 = vmatprep.subr.mxu0 0.0
    %962 = vmatpush2.msra.mxu0 0.0
    %963 = vmatprep.subr.mxu0 0.0
    %964 = vmatpush2.msra.mxu0 0.0
    %965 = vmatprep.subr.mxu0 0.0
    %966 = vmatpush2.msra.mxu0 0.0
    %967 = vmatprep.subr.mxu0 0.0
    %968 = vmatpush2.msra.mxu0 0.0
    %969 = vmatprep.subr.mxu0 0.0
    %970 = vmatpush2.msra.mxu0 0.0
    %971 = vmatprep.subr.mxu0 0.0
    %972 = vmatpush2.msra.mxu0 0.0
    %973 = vmatprep.subr.mxu0 0.0
    %974 = vmatpush2.msra.mxu0 0.0
    %975 = vmatprep.subr.mxu0 0.0
    %976 = vmatpush2.msra.mxu0 0.0
    %977 = vmatprep.subr.mxu0 0.0
    %978 = vmatpush2.msra.mxu0 0.0
    %979 = vmatprep.mubr.f32.mxu0 0.0
    %v980 = vand.u32 %v828, 4294901760
    %981 = vmatmul.mubr.f32.gmra.mxu0 %v980
    %v982 = vpop.f32.mrf.mxu0
    %v983 = vadd.f32 %v907, %v982
    %v984 = vpop.f32.mrf.mxu0
    %985 = vdwg.mxu0
    %986 = vmatprep.subr.mxu0 0.0
    %987 = vmatpush1.msra.mxu0 0.0
    %988 = vmatprep.subr.mxu0 0.0
    %989 = vmatpush1.msra.mxu0 0.0
    %990 = vmatprep.subr.mxu0 0.0
    %991 = vmatpush1.msra.mxu0 0.0
    %992 = vmatprep.subr.mxu0 0.0
    %993 = vmatpush1.msra.mxu0 0.0
    %994 = vmatprep.subr.mxu0 0.0
    %995 = vmatpush1.msra.mxu0 0.0
    %996 = vmatprep.subr.mxu0 0.0
    %997 = vmatpush1.msra.mxu0 0.0
    %998 = vmatprep.subr.mxu0 0.0
    %999 = vmatpush1.msra.mxu0 0.0
    %1000 = vmatprep.subr.mxu0 0.0
    %1001 = vmatpush1.msra.mxu0 0.0
    %1002 = vmatprep.subr.mxu0 0.0
    %1003 = vmatpush1.msra.mxu0 0.0
    %1004 = vmatprep.subr.mxu0 0.0
    %1005 = vmatpush1.msra.mxu0 0.0
    %1006 = vmatprep.subr.mxu0 0.0
    %1007 = vmatpush1.msra.mxu0 0.0
    %1008 = vmatprep.subr.mxu0 0.0
    %1009 = vmatpush1.msra.mxu0 0.0
    %1010 = vmatprep.subr.mxu0 0.0
    %1011 = vmatpush1.msra.mxu0 0.0
    %1012 = vmatprep.subr.mxu0 0.0
    %1013 = vmatpush1.msra.mxu0 0.0
    %1014 = vmatprep.subr.mxu0 0.0
    %1015 = vmatpush1.msra.mxu0 0.0
    %1016 = vmatprep.subr.mxu0 0.0
    %v1017 = vand.u32 %v832, 4294901760
    %v1018 = vsub.f32 %v832, %v1017
    %1019 = vmatpush1.msra.mxu0 %v1018
    %1020 = vmatprep.subr.mxu0 0.0
    %1021 = vmatpush2.msra.mxu0 0.0
    %1022 = vmatprep.subr.mxu0 0.0
    %1023 = vmatpush2.msra.mxu0 0.0
    %1024 = vmatprep.subr.mxu0 0.0
    %1025 = vmatpush2.msra.mxu0 0.0
    %1026 = vmatprep.subr.mxu0 0.0
    %1027 = vmatpush2.msra.mxu0 0.0
    %1028 = vmatprep.subr.mxu0 0.0
    %1029 = vmatpush2.msra.mxu0 0.0
    %1030 = vmatprep.subr.mxu0 0.0
    %1031 = vmatpush2.msra.mxu0 0.0
    %1032 = vmatprep.subr.mxu0 0.0
    %1033 = vmatpush2.msra.mxu0 0.0
    %1034 = vmatprep.subr.mxu0 0.0
    %1035 = vmatpush2.msra.mxu0 0.0
    %1036 = vmatprep.subr.mxu0 0.0
    %1037 = vmatpush2.msra.mxu0 0.0
    %1038 = vmatprep.subr.mxu0 0.0
    %1039 = vmatpush2.msra.mxu0 0.0
    %1040 = vmatprep.subr.mxu0 0.0
    %1041 = vmatpush2.msra.mxu0 0.0
    %1042 = vmatprep.subr.mxu0 0.0
    %1043 = vmatpush2.msra.mxu0 0.0
    %1044 = vmatprep.subr.mxu0 0.0
    %1045 = vmatpush2.msra.mxu0 0.0
    %1046 = vmatprep.subr.mxu0 0.0
    %1047 = vmatpush2.msra.mxu0 0.0
    %1048 = vmatprep.subr.mxu0 0.0
    %1049 = vmatpush2.msra.mxu0 0.0
    %1050 = vmatprep.subr.mxu0 0.0
    %1051 = vmatpush2.msra.mxu0 0.0
    %1052 = vmatprep.mubr.f32.mxu0 0.0
    %v1053 = vand.u32 %v828, 4294901760
    %v1054 = vsub.f32 %v828, %v1053
    %1055 = vmatmul.mubr.f32.gmra.mxu0 %v1054
    %v1056 = vpop.f32.mrf.mxu0
    %v1057 = vadd.f32 %v983, %v1056
    %v1058 = vpop.f32.mrf.mxu0
    %1059 = vdwg.mxu0
    %1060 = vmatprep.subr.mxu0 0.0
    %1061 = vmatpush1.msra.mxu0 0.0
    %1062 = vmatprep.subr.mxu0 0.0
    %1063 = vmatpush1.msra.mxu0 0.0
    %1064 = vmatprep.subr.mxu0 0.0
    %1065 = vmatpush1.msra.mxu0 0.0
    %1066 = vmatprep.subr.mxu0 0.0
    %1067 = vmatpush1.msra.mxu0 0.0
    %1068 = vmatprep.subr.mxu0 0.0
    %1069 = vmatpush1.msra.mxu0 0.0
    %1070 = vmatprep.subr.mxu0 0.0
    %1071 = vmatpush1.msra.mxu0 0.0
    %1072 = vmatprep.subr.mxu0 0.0
    %1073 = vmatpush1.msra.mxu0 0.0
    %1074 = vmatprep.subr.mxu0 0.0
    %1075 = vmatpush1.msra.mxu0 0.0
    %1076 = vmatprep.subr.mxu0 0.0
    %1077 = vmatpush1.msra.mxu0 0.0
    %1078 = vmatprep.subr.mxu0 0.0
    %1079 = vmatpush1.msra.mxu0 0.0
    %1080 = vmatprep.subr.mxu0 0.0
    %1081 = vmatpush1.msra.mxu0 0.0
    %1082 = vmatprep.subr.mxu0 0.0
    %1083 = vmatpush1.msra.mxu0 0.0
    %1084 = vmatprep.subr.mxu0 0.0
    %1085 = vmatpush1.msra.mxu0 0.0
    %1086 = vmatprep.subr.mxu0 0.0
    %1087 = vmatpush1.msra.mxu0 0.0
    %1088 = vmatprep.subr.mxu0 0.0
    %1089 = vmatpush1.msra.mxu0 0.0
    %1090 = vmatprep.subr.mxu0 0.0
    %v1091 = vand.u32 %v832, 4294901760
    %1092 = vmatpush1.msra.mxu0 %v1091
    %1093 = vmatprep.subr.mxu0 0.0
    %1094 = vmatpush2.msra.mxu0 0.0
    %1095 = vmatprep.subr.mxu0 0.0
    %1096 = vmatpush2.msra.mxu0 0.0
    %1097 = vmatprep.subr.mxu0 0.0
    %1098 = vmatpush2.msra.mxu0 0.0
    %1099 = vmatprep.subr.mxu0 0.0
    %1100 = vmatpush2.msra.mxu0 0.0
    %1101 = vmatprep.subr.mxu0 0.0
    %1102 = vmatpush2.msra.mxu0 0.0
    %1103 = vmatprep.subr.mxu0 0.0
    %1104 = vmatpush2.msra.mxu0 0.0
    %1105 = vmatprep.subr.mxu0 0.0
    %1106 = vmatpush2.msra.mxu0 0.0
    %1107 = vmatprep.subr.mxu0 0.0
    %1108 = vmatpush2.msra.mxu0 0.0
    %1109 = vmatprep.subr.mxu0 0.0
    %1110 = vmatpush2.msra.mxu0 0.0
    %1111 = vmatprep.subr.mxu0 0.0
    %1112 = vmatpush2.msra.mxu0 0.0
    %1113 = vmatprep.subr.mxu0 0.0
    %1114 = vmatpush2.msra.mxu0 0.0
    %1115 = vmatprep.subr.mxu0 0.0
    %1116 = vmatpush2.msra.mxu0 0.0
    %1117 = vmatprep.subr.mxu0 0.0
    %1118 = vmatpush2.msra.mxu0 0.0
    %1119 = vmatprep.subr.mxu0 0.0
    %1120 = vmatpush2.msra.mxu0 0.0
    %1121 = vmatprep.subr.mxu0 0.0
    %1122 = vmatpush2.msra.mxu0 0.0
    %1123 = vmatprep.subr.mxu0 0.0
    %1124 = vmatpush2.msra.mxu0 0.0
    %1125 = vmatprep.mubr.f32.mxu0 0.0
    %v1126 = vand.u32 %v828, 4294901760
    %v1127 = vsub.f32 %v828, %v1126
    %v1128 = vand.u32 %v1127, 4294901760
    %1129 = vmatmul.mubr.f32.gmra.mxu0 %v1128
    %v1130 = vpop.f32.mrf.mxu0
    %v1131 = vadd.f32 %v1057, %v1130
    %v1132 = vpop.f32.mrf.mxu0
    %1133 = vdwg.mxu0
    %1134 = vmatprep.subr.mxu0 0.0
    %1135 = vmatpush1.msra.mxu0 0.0
    %1136 = vmatprep.subr.mxu0 0.0
    %1137 = vmatpush1.msra.mxu0 0.0
    %1138 = vmatprep.subr.mxu0 0.0
    %1139 = vmatpush1.msra.mxu0 0.0
    %1140 = vmatprep.subr.mxu0 0.0
    %1141 = vmatpush1.msra.mxu0 0.0
    %1142 = vmatprep.subr.mxu0 0.0
    %1143 = vmatpush1.msra.mxu0 0.0
    %1144 = vmatprep.subr.mxu0 0.0
    %1145 = vmatpush1.msra.mxu0 0.0
    %1146 = vmatprep.subr.mxu0 0.0
    %1147 = vmatpush1.msra.mxu0 0.0
    %1148 = vmatprep.subr.mxu0 0.0
    %1149 = vmatpush1.msra.mxu0 0.0
    %1150 = vmatprep.subr.mxu0 0.0
    %1151 = vmatpush1.msra.mxu0 0.0
    %1152 = vmatprep.subr.mxu0 0.0
    %1153 = vmatpush1.msra.mxu0 0.0
    %1154 = vmatprep.subr.mxu0 0.0
    %1155 = vmatpush1.msra.mxu0 0.0
    %1156 = vmatprep.subr.mxu0 0.0
    %1157 = vmatpush1.msra.mxu0 0.0
    %1158 = vmatprep.subr.mxu0 0.0
    %1159 = vmatpush1.msra.mxu0 0.0
    %1160 = vmatprep.subr.mxu0 0.0
    %1161 = vmatpush1.msra.mxu0 0.0
    %1162 = vmatprep.subr.mxu0 0.0
    %1163 = vmatpush1.msra.mxu0 0.0
    %1164 = vmatprep.subr.mxu0 0.0
    %v1165 = vand.u32 %v832, 4294901760
    %v1166 = vsub.f32 %v832, %v1165
    %v1167 = vand.u32 %v1166, 4294901760
    %1168 = vmatpush1.msra.mxu0 %v1167
    %1169 = vmatprep.subr.mxu0 0.0
    %1170 = vmatpush2.msra.mxu0 0.0
    %1171 = vmatprep.subr.mxu0 0.0
    %1172 = vmatpush2.msra.mxu0 0.0
    %1173 = vmatprep.subr.mxu0 0.0
    %1174 = vmatpush2.msra.mxu0 0.0
    %1175 = vmatprep.subr.mxu0 0.0
    %1176 = vmatpush2.msra.mxu0 0.0
    %1177 = vmatprep.subr.mxu0 0.0
    %1178 = vmatpush2.msra.mxu0 0.0
    %1179 = vmatprep.subr.mxu0 0.0
    %1180 = vmatpush2.msra.mxu0 0.0
    %1181 = vmatprep.subr.mxu0 0.0
    %1182 = vmatpush2.msra.mxu0 0.0
    %1183 = vmatprep.subr.mxu0 0.0
    %1184 = vmatpush2.msra.mxu0 0.0
    %1185 = vmatprep.subr.mxu0 0.0
    %1186 = vmatpush2.msra.mxu0 0.0
    %1187 = vmatprep.subr.mxu0 0.0
    %1188 = vmatpush2.msra.mxu0 0.0
    %1189 = vmatprep.subr.mxu0 0.0
    %1190 = vmatpush2.msra.mxu0 0.0
    %1191 = vmatprep.subr.mxu0 0.0
    %1192 = vmatpush2.msra.mxu0 0.0
    %1193 = vmatprep.subr.mxu0 0.0
    %1194 = vmatpush2.msra.mxu0 0.0
    %1195 = vmatprep.subr.mxu0 0.0
    %1196 = vmatpush2.msra.mxu0 0.0
    %1197 = vmatprep.subr.mxu0 0.0
    %1198 = vmatpush2.msra.mxu0 0.0
    %1199 = vmatprep.subr.mxu0 0.0
    %1200 = vmatpush2.msra.mxu0 0.0
    %1201 = vmatprep.mubr.f32.mxu0 0.0
    %v1202 = vand.u32 %v828, 4294901760
    %1203 = vmatmul.mubr.f32.gmra.mxu0 %v1202
    %v1204 = vpop.f32.mrf.mxu0
    %v1205 = vadd.f32 %v1131, %v1204
    %v1206 = vpop.f32.mrf.mxu0
    %1207 = vdwg.mxu0
    %1208 = vmatprep.subr.mxu0 0.0
    %1209 = vmatpush1.msra.mxu0 0.0
    %1210 = vmatprep.subr.mxu0 0.0
    %1211 = vmatpush1.msra.mxu0 0.0
    %1212 = vmatprep.subr.mxu0 0.0
    %1213 = vmatpush1.msra.mxu0 0.0
    %1214 = vmatprep.subr.mxu0 0.0
    %1215 = vmatpush1.msra.mxu0 0.0
    %1216 = vmatprep.subr.mxu0 0.0
    %1217 = vmatpush1.msra.mxu0 0.0
    %1218 = vmatprep.subr.mxu0 0.0
    %1219 = vmatpush1.msra.mxu0 0.0
    %1220 = vmatprep.subr.mxu0 0.0
    %1221 = vmatpush1.msra.mxu0 0.0
    %1222 = vmatprep.subr.mxu0 0.0
    %1223 = vmatpush1.msra.mxu0 0.0
    %1224 = vmatprep.subr.mxu0 0.0
    %1225 = vmatpush1.msra.mxu0 0.0
    %1226 = vmatprep.subr.mxu0 0.0
    %1227 = vmatpush1.msra.mxu0 0.0
    %1228 = vmatprep.subr.mxu0 0.0
    %1229 = vmatpush1.msra.mxu0 0.0
    %1230 = vmatprep.subr.mxu0 0.0
    %1231 = vmatpush1.msra.mxu0 0.0
    %1232 = vmatprep.subr.mxu0 0.0
    %1233 = vmatpush1.msra.mxu0 0.0
    %1234 = vmatprep.subr.mxu0 0.0
    %1235 = vmatpush1.msra.mxu0 0.0
    %1236 = vmatprep.subr.mxu0 0.0
    %1237 = vmatpush1.msra.mxu0 0.0
    %1238 = vmatprep.subr.mxu0 0.0
    %v1239 = vand.u32 %v832, 4294901760
    %1240 = vmatpush1.msra.mxu0 %v1239
    %1241 = vmatprep.subr.mxu0 0.0
    %1242 = vmatpush2.msra.mxu0 0.0
    %1243 = vmatprep.subr.mxu0 0.0
    %1244 = vmatpush2.msra.mxu0 0.0
    %1245 = vmatprep.subr.mxu0 0.0
    %1246 = vmatpush2.msra.mxu0 0.0
    %1247 = vmatprep.subr.mxu0 0.0
    %1248 = vmatpush2.msra.mxu0 0.0
    %1249 = vmatprep.subr.mxu0 0.0
    %1250 = vmatpush2.msra.mxu0 0.0
    %1251 = vmatprep.subr.mxu0 0.0
    %1252 = vmatpush2.msra.mxu0 0.0
    %1253 = vmatprep.subr.mxu0 0.0
    %1254 = vmatpush2.msra.mxu0 0.0
    %1255 = vmatprep.subr.mxu0 0.0
    %1256 = vmatpush2.msra.mxu0 0.0
    %1257 = vmatprep.subr.mxu0 0.0
    %1258 = vmatpush2.msra.mxu0 0.0
    %1259 = vmatprep.subr.mxu0 0.0
    %1260 = vmatpush2.msra.mxu0 0.0
    %1261 = vmatprep.subr.mxu0 0.0
    %1262 = vmatpush2.msra.mxu0 0.0
    %1263 = vmatprep.subr.mxu0 0.0
    %1264 = vmatpush2.msra.mxu0 0.0
    %1265 = vmatprep.subr.mxu0 0.0
    %1266 = vmatpush2.msra.mxu0 0.0
    %1267 = vmatprep.subr.mxu0 0.0
    %1268 = vmatpush2.msra.mxu0 0.0
    %1269 = vmatprep.subr.mxu0 0.0
    %1270 = vmatpush2.msra.mxu0 0.0
    %1271 = vmatprep.subr.mxu0 0.0
    %1272 = vmatpush2.msra.mxu0 0.0
    %1273 = vmatprep.mubr.f32.mxu0 0.0
    %v1274 = vand.u32 %v828, 4294901760
    %1275 = vmatmul.mubr.f32.gmra.mxu0 %v1274
    %v1276 = vpop.f32.mrf.mxu0
    %v1277 = vadd.f32 %v1205, %v1276
    %v1278 = vpop.f32.mrf.mxu0
    %1279 = vdwg.mxu0
    %v1280 = vcvt.s32.f32 %v39
    %vm1281 = vcmp.eq.f32.partialorder %v1280, %v1277
    %v1282 = vsel %vm1281, %v75, 0.0
    %1283 = vmatprep.subr.mxu0 0.0
    %v1284 = vand.u32 %v175, 4294901760
    %1285 = vmatpush1.msra.mxu0 %v1284
    %1286 = vmatprep.subr.mxu0 0.0
    %v1287 = vand.u32 %v174, 4294901760
    %1288 = vmatpush1.msra.mxu0 %v1287
    %1289 = vmatprep.subr.mxu0 0.0
    %v1290 = vand.u32 %v173, 4294901760
    %1291 = vmatpush1.msra.mxu0 %v1290
    %1292 = vmatprep.subr.mxu0 0.0
    %v1293 = vand.u32 %v172, 4294901760
    %1294 = vmatpush1.msra.mxu0 %v1293
    %1295 = vmatprep.subr.mxu0 0.0
    %v1296 = vand.u32 %v171, 4294901760
    %1297 = vmatpush1.msra.mxu0 %v1296
    %1298 = vmatprep.subr.mxu0 0.0
    %v1299 = vand.u32 %v170, 4294901760
    %1300 = vmatpush1.msra.mxu0 %v1299
    %1301 = vmatprep.subr.mxu0 0.0
    %v1302 = vand.u32 %v169, 4294901760
    %1303 = vmatpush1.msra.mxu0 %v1302
    %1304 = vmatprep.subr.mxu0 0.0
    %v1305 = vand.u32 %v168, 4294901760
    %1306 = vmatpush1.msra.mxu0 %v1305
    %1307 = vmatprep.subr.mxu0 0.0
    %v1308 = vand.u32 %v167, 4294901760
    %1309 = vmatpush1.msra.mxu0 %v1308
    %1310 = vmatprep.subr.mxu0 0.0
    %v1311 = vand.u32 %v166, 4294901760
    %1312 = vmatpush1.msra.mxu0 %v1311
    %1313 = vmatprep.subr.mxu0 0.0
    %v1314 = vand.u32 %v165, 4294901760
    %1315 = vmatpush1.msra.mxu0 %v1314
    %1316 = vmatprep.subr.mxu0 0.0
    %v1317 = vand.u32 %v164, 4294901760
    %1318 = vmatpush1.msra.mxu0 %v1317
    %1319 = vmatprep.subr.mxu0 0.0
    %v1320 = vand.u32 %v163, 4294901760
    %1321 = vmatpush1.msra.mxu0 %v1320
    %1322 = vmatprep.subr.mxu0 0.0
    %v1323 = vand.u32 %v162, 4294901760
    %1324 = vmatpush1.msra.mxu0 %v1323
    %1325 = vmatprep.subr.mxu0 0.0
    %v1326 = vand.u32 %v161, 4294901760
    %1327 = vmatpush1.msra.mxu0 %v1326
    %1328 = vmatprep.subr.mxu0 0.0
    %v1329 = vand.u32 %v160, 4294901760
    %1330 = vmatpush1.msra.mxu0 %v1329
    %1331 = vmatprep.subr.mxu0 0.0
    %1332 = vmatpush2.msra.mxu0 0.0
    %1333 = vmatprep.subr.mxu0 0.0
    %1334 = vmatpush2.msra.mxu0 0.0
    %1335 = vmatprep.subr.mxu0 0.0
    %1336 = vmatpush2.msra.mxu0 0.0
    %1337 = vmatprep.subr.mxu0 0.0
    %1338 = vmatpush2.msra.mxu0 0.0
    %1339 = vmatprep.subr.mxu0 0.0
    %1340 = vmatpush2.msra.mxu0 0.0
    %1341 = vmatprep.subr.mxu0 0.0
    %1342 = vmatpush2.msra.mxu0 0.0
    %1343 = vmatprep.subr.mxu0 0.0
    %1344 = vmatpush2.msra.mxu0 0.0
    %1345 = vmatprep.subr.mxu0 0.0
    %1346 = vmatpush2.msra.mxu0 0.0
    %1347 = vmatprep.subr.mxu0 0.0
    %1348 = vmatpush2.msra.mxu0 0.0
    %1349 = vmatprep.subr.mxu0 0.0
    %1350 = vmatpush2.msra.mxu0 0.0
    %1351 = vmatprep.subr.mxu0 0.0
    %1352 = vmatpush2.msra.mxu0 0.0
    %1353 = vmatprep.subr.mxu0 0.0
    %1354 = vmatpush2.msra.mxu0 0.0
    %1355 = vmatprep.subr.mxu0 0.0
    %1356 = vmatpush2.msra.mxu0 0.0
    %1357 = vmatprep.subr.mxu0 0.0
    %1358 = vmatpush2.msra.mxu0 0.0
    %1359 = vmatprep.subr.mxu0 0.0
    %1360 = vmatpush2.msra.mxu0 0.0
    %1361 = vmatprep.subr.mxu0 0.0
    %1362 = vmatpush2.msra.mxu0 0.0
    %1363 = vmatprep.mubr.f32.mxu0 0.0
    %v1364 = vand.u32 %v1282, 4294901760
    %v1365 = vsub.f32 %v1282, %v1364
    %v1366 = vand.u32 %v1365, 4294901760
    %v1367 = vsub.f32 %v1365, %v1366
    %v1368 = vand.u32 %v1367, 4294901760
    %1369 = vmatmul.mubr.f32.gmra.mxu0 %v1368
    %v1370 = vpop.f32.mrf.mxu0
    %v1371 = vadd.f32 0.0, %v1370
    %v1372 = vpop.f32.mrf.mxu0
    %1373 = vdwg.mxu0
    %1374 = vmatprep.subr.mxu0 0.0
    %v1375 = vand.u32 %v175, 4294901760
    %v1376 = vsub.f32 %v175, %v1375
    %v1377 = vand.u32 %v1376, 4294901760
    %v1378 = vsub.f32 %v1376, %v1377
    %v1379 = vand.u32 %v1378, 4294901760
    %1380 = vmatpush1.msra.mxu0 %v1379
    %1381 = vmatprep.subr.mxu0 0.0
    %v1382 = vand.u32 %v174, 4294901760
    %v1383 = vsub.f32 %v174, %v1382
    %v1384 = vand.u32 %v1383, 4294901760
    %v1385 = vsub.f32 %v1383, %v1384
    %v1386 = vand.u32 %v1385, 4294901760
    %1387 = vmatpush1.msra.mxu0 %v1386
    %1388 = vmatprep.subr.mxu0 0.0
    %v1389 = vand.u32 %v173, 4294901760
    %v1390 = vsub.f32 %v173, %v1389
    %v1391 = vand.u32 %v1390, 4294901760
    %v1392 = vsub.f32 %v1390, %v1391
    %v1393 = vand.u32 %v1392, 4294901760
    %1394 = vmatpush1.msra.mxu0 %v1393
    %1395 = vmatprep.subr.mxu0 0.0
    %v1396 = vand.u32 %v172, 4294901760
    %v1397 = vsub.f32 %v172, %v1396
    %v1398 = vand.u32 %v1397, 4294901760
    %v1399 = vsub.f32 %v1397, %v1398
    %v1400 = vand.u32 %v1399, 4294901760
    %1401 = vmatpush1.msra.mxu0 %v1400
    %1402 = vmatprep.subr.mxu0 0.0
    %v1403 = vand.u32 %v171, 4294901760
    %v1404 = vsub.f32 %v171, %v1403
    %v1405 = vand.u32 %v1404, 4294901760
    %v1406 = vsub.f32 %v1404, %v1405
    %v1407 = vand.u32 %v1406, 4294901760
    %1408 = vmatpush1.msra.mxu0 %v1407
    %1409 = vmatprep.subr.mxu0 0.0
    %v1410 = vand.u32 %v170, 4294901760
    %v1411 = vsub.f32 %v170, %v1410
    %v1412 = vand.u32 %v1411, 4294901760
    %v1413 = vsub.f32 %v1411, %v1412
    %v1414 = vand.u32 %v1413, 4294901760
    %1415 = vmatpush1.msra.mxu0 %v1414
    %1416 = vmatprep.subr.mxu0 0.0
    %v1417 = vand.u32 %v169, 4294901760
    %v1418 = vsub.f32 %v169, %v1417
    %v1419 = vand.u32 %v1418, 4294901760
    %v1420 = vsub.f32 %v1418, %v1419
    %v1421 = vand.u32 %v1420, 4294901760
    %1422 = vmatpush1.msra.mxu0 %v1421
    %1423 = vmatprep.subr.mxu0 0.0
    %v1424 = vand.u32 %v168, 4294901760
    %v1425 = vsub.f32 %v168, %v1424
    %v1426 = vand.u32 %v1425, 4294901760
    %v1427 = vsub.f32 %v1425, %v1426
    %v1428 = vand.u32 %v1427, 4294901760
    %1429 = vmatpush1.msra.mxu0 %v1428
    %1430 = vmatprep.subr.mxu0 0.0
    %v1431 = vand.u32 %v167, 4294901760
    %v1432 = vsub.f32 %v167, %v1431
    %v1433 = vand.u32 %v1432, 4294901760
    %v1434 = vsub.f32 %v1432, %v1433
    %v1435 = vand.u32 %v1434, 4294901760
    %1436 = vmatpush1.msra.mxu0 %v1435
    %1437 = vmatprep.subr.mxu0 0.0
    %v1438 = vand.u32 %v166, 4294901760
    %v1439 = vsub.f32 %v166, %v1438
    %v1440 = vand.u32 %v1439, 4294901760
    %v1441 = vsub.f32 %v1439, %v1440
    %v1442 = vand.u32 %v1441, 4294901760
    %1443 = vmatpush1.msra.mxu0 %v1442
    %1444 = vmatprep.subr.mxu0 0.0
    %v1445 = vand.u32 %v165, 4294901760
    %v1446 = vsub.f32 %v165, %v1445
    %v1447 = vand.u32 %v1446, 4294901760
    %v1448 = vsub.f32 %v1446, %v1447
    %v1449 = vand.u32 %v1448, 4294901760
    %1450 = vmatpush1.msra.mxu0 %v1449
    %1451 = vmatprep.subr.mxu0 0.0
    %v1452 = vand.u32 %v164, 4294901760
    %v1453 = vsub.f32 %v164, %v1452
    %v1454 = vand.u32 %v1453, 4294901760
    %v1455 = vsub.f32 %v1453, %v1454
    %v1456 = vand.u32 %v1455, 4294901760
    %1457 = vmatpush1.msra.mxu0 %v1456
    %1458 = vmatprep.subr.mxu0 0.0
    %v1459 = vand.u32 %v163, 4294901760
    %v1460 = vsub.f32 %v163, %v1459
    %v1461 = vand.u32 %v1460, 4294901760
    %v1462 = vsub.f32 %v1460, %v1461
    %v1463 = vand.u32 %v1462, 4294901760
    %1464 = vmatpush1.msra.mxu0 %v1463
    %1465 = vmatprep.subr.mxu0 0.0
    %v1466 = vand.u32 %v162, 4294901760
    %v1467 = vsub.f32 %v162, %v1466
    %v1468 = vand.u32 %v1467, 4294901760
    %v1469 = vsub.f32 %v1467, %v1468
    %v1470 = vand.u32 %v1469, 4294901760
    %1471 = vmatpush1.msra.mxu0 %v1470
    %1472 = vmatprep.subr.mxu0 0.0
    %v1473 = vand.u32 %v161, 4294901760
    %v1474 = vsub.f32 %v161, %v1473
    %v1475 = vand.u32 %v1474, 4294901760
    %v1476 = vsub.f32 %v1474, %v1475
    %v1477 = vand.u32 %v1476, 4294901760
    %1478 = vmatpush1.msra.mxu0 %v1477
    %1479 = vmatprep.subr.mxu0 0.0
    %v1480 = vand.u32 %v160, 4294901760
    %v1481 = vsub.f32 %v160, %v1480
    %v1482 = vand.u32 %v1481, 4294901760
    %v1483 = vsub.f32 %v1481, %v1482
    %v1484 = vand.u32 %v1483, 4294901760
    %1485 = vmatpush1.msra.mxu0 %v1484
    %1486 = vmatprep.subr.mxu0 0.0
    %1487 = vmatpush2.msra.mxu0 0.0
    %1488 = vmatprep.subr.mxu0 0.0
    %1489 = vmatpush2.msra.mxu0 0.0
    %1490 = vmatprep.subr.mxu0 0.0
    %1491 = vmatpush2.msra.mxu0 0.0
    %1492 = vmatprep.subr.mxu0 0.0
    %1493 = vmatpush2.msra.mxu0 0.0
    %1494 = vmatprep.subr.mxu0 0.0
    %1495 = vmatpush2.msra.mxu0 0.0
    %1496 = vmatprep.subr.mxu0 0.0
    %1497 = vmatpush2.msra.mxu0 0.0
    %1498 = vmatprep.subr.mxu0 0.0
    %1499 = vmatpush2.msra.mxu0 0.0
    %1500 = vmatprep.subr.mxu0 0.0
    %1501 = vmatpush2.msra.mxu0 0.0
    %1502 = vmatprep.subr.mxu0 0.0
    %1503 = vmatpush2.msra.mxu0 0.0
    %1504 = vmatprep.subr.mxu0 0.0
    %1505 = vmatpush2.msra.mxu0 0.0
    %1506 = vmatprep.subr.mxu0 0.0
    %1507 = vmatpush2.msra.mxu0 0.0
    %1508 = vmatprep.subr.mxu0 0.0
    %1509 = vmatpush2.msra.mxu0 0.0
    %1510 = vmatprep.subr.mxu0 0.0
    %1511 = vmatpush2.msra.mxu0 0.0
    %1512 = vmatprep.subr.mxu0 0.0
    %1513 = vmatpush2.msra.mxu0 0.0
    %1514 = vmatprep.subr.mxu0 0.0
    %1515 = vmatpush2.msra.mxu0 0.0
    %1516 = vmatprep.subr.mxu0 0.0
    %1517 = vmatpush2.msra.mxu0 0.0
    %1518 = vmatprep.mubr.f32.mxu0 0.0
    %v1519 = vand.u32 %v1282, 4294901760
    %1520 = vmatmul.mubr.f32.gmra.mxu0 %v1519
    %v1521 = vpop.f32.mrf.mxu0
    %v1522 = vadd.f32 %v1371, %v1521
    %v1523 = vpop.f32.mrf.mxu0
    %1524 = vdwg.mxu0
    %1525 = vmatprep.subr.mxu0 0.0
    %v1526 = vand.u32 %v175, 4294901760
    %v1527 = vsub.f32 %v175, %v1526
    %1528 = vmatpush1.msra.mxu0 %v1527
    %1529 = vmatprep.subr.mxu0 0.0
    %v1530 = vand.u32 %v174, 4294901760
    %v1531 = vsub.f32 %v174, %v1530
    %1532 = vmatpush1.msra.mxu0 %v1531
    %1533 = vmatprep.subr.mxu0 0.0
    %v1534 = vand.u32 %v173, 4294901760
    %v1535 = vsub.f32 %v173, %v1534
    %1536 = vmatpush1.msra.mxu0 %v1535
    %1537 = vmatprep.subr.mxu0 0.0
    %v1538 = vand.u32 %v172, 4294901760
    %v1539 = vsub.f32 %v172, %v1538
    %1540 = vmatpush1.msra.mxu0 %v1539
    %1541 = vmatprep.subr.mxu0 0.0
    %v1542 = vand.u32 %v171, 4294901760
    %v1543 = vsub.f32 %v171, %v1542
    %1544 = vmatpush1.msra.mxu0 %v1543
    %1545 = vmatprep.subr.mxu0 0.0
    %v1546 = vand.u32 %v170, 4294901760
    %v1547 = vsub.f32 %v170, %v1546
    %1548 = vmatpush1.msra.mxu0 %v1547
    %1549 = vmatprep.subr.mxu0 0.0
    %v1550 = vand.u32 %v169, 4294901760
    %v1551 = vsub.f32 %v169, %v1550
    %1552 = vmatpush1.msra.mxu0 %v1551
    %1553 = vmatprep.subr.mxu0 0.0
    %v1554 = vand.u32 %v168, 4294901760
    %v1555 = vsub.f32 %v168, %v1554
    %1556 = vmatpush1.msra.mxu0 %v1555
    %1557 = vmatprep.subr.mxu0 0.0
    %v1558 = vand.u32 %v167, 4294901760
    %v1559 = vsub.f32 %v167, %v1558
    %1560 = vmatpush1.msra.mxu0 %v1559
    %1561 = vmatprep.subr.mxu0 0.0
    %v1562 = vand.u32 %v166, 4294901760
    %v1563 = vsub.f32 %v166, %v1562
    %1564 = vmatpush1.msra.mxu0 %v1563
    %1565 = vmatprep.subr.mxu0 0.0
    %v1566 = vand.u32 %v165, 4294901760
    %v1567 = vsub.f32 %v165, %v1566
    %1568 = vmatpush1.msra.mxu0 %v1567
    %1569 = vmatprep.subr.mxu0 0.0
    %v1570 = vand.u32 %v164, 4294901760
    %v1571 = vsub.f32 %v164, %v1570
    %1572 = vmatpush1.msra.mxu0 %v1571
    %1573 = vmatprep.subr.mxu0 0.0
    %v1574 = vand.u32 %v163, 4294901760
    %v1575 = vsub.f32 %v163, %v1574
    %1576 = vmatpush1.msra.mxu0 %v1575
    %1577 = vmatprep.subr.mxu0 0.0
    %v1578 = vand.u32 %v162, 4294901760
    %v1579 = vsub.f32 %v162, %v1578
    %1580 = vmatpush1.msra.mxu0 %v1579
    %1581 = vmatprep.subr.mxu0 0.0
    %v1582 = vand.u32 %v161, 4294901760
    %v1583 = vsub.f32 %v161, %v1582
    %1584 = vmatpush1.msra.mxu0 %v1583
    %1585 = vmatprep.subr.mxu0 0.0
    %v1586 = vand.u32 %v160, 4294901760
    %v1587 = vsub.f32 %v160, %v1586
    %1588 = vmatpush1.msra.mxu0 %v1587
    %1589 = vmatprep.subr.mxu0 0.0
    %1590 = vmatpush2.msra.mxu0 0.0
    %1591 = vmatprep.subr.mxu0 0.0
    %1592 = vmatpush2.msra.mxu0 0.0
    %1593 = vmatprep.subr.mxu0 0.0
    %1594 = vmatpush2.msra.mxu0 0.0
    %1595 = vmatprep.subr.mxu0 0.0
    %1596 = vmatpush2.msra.mxu0 0.0
    %1597 = vmatprep.subr.mxu0 0.0
    %1598 = vmatpush2.msra.mxu0 0.0
    %1599 = vmatprep.subr.mxu0 0.0
    %1600 = vmatpush2.msra.mxu0 0.0
    %1601 = vmatprep.subr.mxu0 0.0
    %1602 = vmatpush2.msra.mxu0 0.0
    %1603 = vmatprep.subr.mxu0 0.0
    %1604 = vmatpush2.msra.mxu0 0.0
    %1605 = vmatprep.subr.mxu0 0.0
    %1606 = vmatpush2.msra.mxu0 0.0
    %1607 = vmatprep.subr.mxu0 0.0
    %1608 = vmatpush2.msra.mxu0 0.0
    %1609 = vmatprep.subr.mxu0 0.0
    %1610 = vmatpush2.msra.mxu0 0.0
    %1611 = vmatprep.subr.mxu0 0.0
    %1612 = vmatpush2.msra.mxu0 0.0
    %1613 = vmatprep.subr.mxu0 0.0
    %1614 = vmatpush2.msra.mxu0 0.0
    %1615 = vmatprep.subr.mxu0 0.0
    %1616 = vmatpush2.msra.mxu0 0.0
    %1617 = vmatprep.subr.mxu0 0.0
    %1618 = vmatpush2.msra.mxu0 0.0
    %1619 = vmatprep.subr.mxu0 0.0
    %1620 = vmatpush2.msra.mxu0 0.0
    %1621 = vmatprep.mubr.f32.mxu0 0.0
    %v1622 = vand.u32 %v1282, 4294901760
    %v1623 = vsub.f32 %v1282, %v1622
    %1624 = vmatmul.mubr.f32.gmra.mxu0 %v1623
    %v1625 = vpop.f32.mrf.mxu0
    %v1626 = vadd.f32 %v1522, %v1625
    %v1627 = vpop.f32.mrf.mxu0
    %1628 = vdwg.mxu0
    %1629 = vmatprep.subr.mxu0 0.0
    %v1630 = vand.u32 %v175, 4294901760
    %1631 = vmatpush1.msra.mxu0 %v1630
    %1632 = vmatprep.subr.mxu0 0.0
    %v1633 = vand.u32 %v174, 4294901760
    %1634 = vmatpush1.msra.mxu0 %v1633
    %1635 = vmatprep.subr.mxu0 0.0
    %v1636 = vand.u32 %v173, 4294901760
    %1637 = vmatpush1.msra.mxu0 %v1636
    %1638 = vmatprep.subr.mxu0 0.0
    %v1639 = vand.u32 %v172, 4294901760
    %1640 = vmatpush1.msra.mxu0 %v1639
    %1641 = vmatprep.subr.mxu0 0.0
    %v1642 = vand.u32 %v171, 4294901760
    %1643 = vmatpush1.msra.mxu0 %v1642
    %1644 = vmatprep.subr.mxu0 0.0
    %v1645 = vand.u32 %v170, 4294901760
    %1646 = vmatpush1.msra.mxu0 %v1645
    %1647 = vmatprep.subr.mxu0 0.0
    %v1648 = vand.u32 %v169, 4294901760
    %1649 = vmatpush1.msra.mxu0 %v1648
    %1650 = vmatprep.subr.mxu0 0.0
    %v1651 = vand.u32 %v168, 4294901760
    %1652 = vmatpush1.msra.mxu0 %v1651
    %1653 = vmatprep.subr.mxu0 0.0
    %v1654 = vand.u32 %v167, 4294901760
    %1655 = vmatpush1.msra.mxu0 %v1654
    %1656 = vmatprep.subr.mxu0 0.0
    %v1657 = vand.u32 %v166, 4294901760
    %1658 = vmatpush1.msra.mxu0 %v1657
    %1659 = vmatprep.subr.mxu0 0.0
    %v1660 = vand.u32 %v165, 4294901760
    %1661 = vmatpush1.msra.mxu0 %v1660
    %1662 = vmatprep.subr.mxu0 0.0
    %v1663 = vand.u32 %v164, 4294901760
    %1664 = vmatpush1.msra.mxu0 %v1663
    %1665 = vmatprep.subr.mxu0 0.0
    %v1666 = vand.u32 %v163, 4294901760
    %1667 = vmatpush1.msra.mxu0 %v1666
    %1668 = vmatprep.subr.mxu0 0.0
    %v1669 = vand.u32 %v162, 4294901760
    %1670 = vmatpush1.msra.mxu0 %v1669
    %1671 = vmatprep.subr.mxu0 0.0
    %v1672 = vand.u32 %v161, 4294901760
    %1673 = vmatpush1.msra.mxu0 %v1672
    %1674 = vmatprep.subr.mxu0 0.0
    %v1675 = vand.u32 %v160, 4294901760
    %1676 = vmatpush1.msra.mxu0 %v1675
    %1677 = vmatprep.subr.mxu0 0.0
    %1678 = vmatpush2.msra.mxu0 0.0
    %1679 = vmatprep.subr.mxu0 0.0
    %1680 = vmatpush2.msra.mxu0 0.0
    %1681 = vmatprep.subr.mxu0 0.0
    %1682 = vmatpush2.msra.mxu0 0.0
    %1683 = vmatprep.subr.mxu0 0.0
    %1684 = vmatpush2.msra.mxu0 0.0
    %1685 = vmatprep.subr.mxu0 0.0
    %1686 = vmatpush2.msra.mxu0 0.0
    %1687 = vmatprep.subr.mxu0 0.0
    %1688 = vmatpush2.msra.mxu0 0.0
    %1689 = vmatprep.subr.mxu0 0.0
    %1690 = vmatpush2.msra.mxu0 0.0
    %1691 = vmatprep.subr.mxu0 0.0
    %1692 = vmatpush2.msra.mxu0 0.0
    %1693 = vmatprep.subr.mxu0 0.0
    %1694 = vmatpush2.msra.mxu0 0.0
    %1695 = vmatprep.subr.mxu0 0.0
    %1696 = vmatpush2.msra.mxu0 0.0
    %1697 = vmatprep.subr.mxu0 0.0
    %1698 = vmatpush2.msra.mxu0 0.0
    %1699 = vmatprep.subr.mxu0 0.0
    %1700 = vmatpush2.msra.mxu0 0.0
    %1701 = vmatprep.subr.mxu0 0.0
    %1702 = vmatpush2.msra.mxu0 0.0
    %1703 = vmatprep.subr.mxu0 0.0
    %1704 = vmatpush2.msra.mxu0 0.0
    %1705 = vmatprep.subr.mxu0 0.0
    %1706 = vmatpush2.msra.mxu0 0.0
    %1707 = vmatprep.subr.mxu0 0.0
    %1708 = vmatpush2.msra.mxu0 0.0
    %1709 = vmatprep.mubr.f32.mxu0 0.0
    %v1710 = vand.u32 %v1282, 4294901760
    %v1711 = vsub.f32 %v1282, %v1710
    %v1712 = vand.u32 %v1711, 4294901760
    %1713 = vmatmul.mubr.f32.gmra.mxu0 %v1712
    %v1714 = vpop.f32.mrf.mxu0
    %v1715 = vadd.f32 %v1626, %v1714
    %v1716 = vpop.f32.mrf.mxu0
    %1717 = vdwg.mxu0
    %1718 = vmatprep.subr.mxu0 0.0
    %v1719 = vand.u32 %v175, 4294901760
    %v1720 = vsub.f32 %v175, %v1719
    %v1721 = vand.u32 %v1720, 4294901760
    %1722 = vmatpush1.msra.mxu0 %v1721
    %1723 = vmatprep.subr.mxu0 0.0
    %v1724 = vand.u32 %v174, 4294901760
    %v1725 = vsub.f32 %v174, %v1724
    %v1726 = vand.u32 %v1725, 4294901760
    %1727 = vmatpush1.msra.mxu0 %v1726
    %1728 = vmatprep.subr.mxu0 0.0
    %v1729 = vand.u32 %v173, 4294901760
    %v1730 = vsub.f32 %v173, %v1729
    %v1731 = vand.u32 %v1730, 4294901760
    %1732 = vmatpush1.msra.mxu0 %v1731
    %1733 = vmatprep.subr.mxu0 0.0
    %v1734 = vand.u32 %v172, 4294901760
    %v1735 = vsub.f32 %v172, %v1734
    %v1736 = vand.u32 %v1735, 4294901760
    %1737 = vmatpush1.msra.mxu0 %v1736
    %1738 = vmatprep.subr.mxu0 0.0
    %v1739 = vand.u32 %v171, 4294901760
    %v1740 = vsub.f32 %v171, %v1739
    %v1741 = vand.u32 %v1740, 4294901760
    %1742 = vmatpush1.msra.mxu0 %v1741
    %1743 = vmatprep.subr.mxu0 0.0
    %v1744 = vand.u32 %v170, 4294901760
    %v1745 = vsub.f32 %v170, %v1744
    %v1746 = vand.u32 %v1745, 4294901760
    %1747 = vmatpush1.msra.mxu0 %v1746
    %1748 = vmatprep.subr.mxu0 0.0
    %v1749 = vand.u32 %v169, 4294901760
    %v1750 = vsub.f32 %v169, %v1749
    %v1751 = vand.u32 %v1750, 4294901760
    %1752 = vmatpush1.msra.mxu0 %v1751
    %1753 = vmatprep.subr.mxu0 0.0
    %v1754 = vand.u32 %v168, 4294901760
    %v1755 = vsub.f32 %v168, %v1754
    %v1756 = vand.u32 %v1755, 4294901760
    %1757 = vmatpush1.msra.mxu0 %v1756
    %1758 = vmatprep.subr.mxu0 0.0
    %v1759 = vand.u32 %v167, 4294901760
    %v1760 = vsub.f32 %v167, %v1759
    %v1761 = vand.u32 %v1760, 4294901760
    %1762 = vmatpush1.msra.mxu0 %v1761
    %1763 = vmatprep.subr.mxu0 0.0
    %v1764 = vand.u32 %v166, 4294901760
    %v1765 = vsub.f32 %v166, %v1764
    %v1766 = vand.u32 %v1765, 4294901760
    %1767 = vmatpush1.msra.mxu0 %v1766
    %1768 = vmatprep.subr.mxu0 0.0
    %v1769 = vand.u32 %v165, 4294901760
    %v1770 = vsub.f32 %v165, %v1769
    %v1771 = vand.u32 %v1770, 4294901760
    %1772 = vmatpush1.msra.mxu0 %v1771
    %1773 = vmatprep.subr.mxu0 0.0
    %v1774 = vand.u32 %v164, 4294901760
    %v1775 = vsub.f32 %v164, %v1774
    %v1776 = vand.u32 %v1775, 4294901760
    %1777 = vmatpush1.msra.mxu0 %v1776
    %1778 = vmatprep.subr.mxu0 0.0
    %v1779 = vand.u32 %v163, 4294901760
    %v1780 = vsub.f32 %v163, %v1779
    %v1781 = vand.u32 %v1780, 4294901760
    %1782 = vmatpush1.msra.mxu0 %v1781
    %1783 = vmatprep.subr.mxu0 0.0
    %v1784 = vand.u32 %v162, 4294901760
    %v1785 = vsub.f32 %v162, %v1784
    %v1786 = vand.u32 %v1785, 4294901760
    %1787 = vmatpush1.msra.mxu0 %v1786
    %1788 = vmatprep.subr.mxu0 0.0
    %v1789 = vand.u32 %v161, 4294901760
    %v1790 = vsub.f32 %v161, %v1789
    %v1791 = vand.u32 %v1790, 4294901760
    %1792 = vmatpush1.msra.mxu0 %v1791
    %1793 = vmatprep.subr.mxu0 0.0
    %v1794 = vand.u32 %v160, 4294901760
    %v1795 = vsub.f32 %v160, %v1794
    %v1796 = vand.u32 %v1795, 4294901760
    %1797 = vmatpush1.msra.mxu0 %v1796
    %1798 = vmatprep.subr.mxu0 0.0
    %1799 = vmatpush2.msra.mxu0 0.0
    %1800 = vmatprep.subr.mxu0 0.0
    %1801 = vmatpush2.msra.mxu0 0.0
    %1802 = vmatprep.subr.mxu0 0.0
    %1803 = vmatpush2.msra.mxu0 0.0
    %1804 = vmatprep.subr.mxu0 0.0
    %1805 = vmatpush2.msra.mxu0 0.0
    %1806 = vmatprep.subr.mxu0 0.0
    %1807 = vmatpush2.msra.mxu0 0.0
    %1808 = vmatprep.subr.mxu0 0.0
    %1809 = vmatpush2.msra.mxu0 0.0
    %1810 = vmatprep.subr.mxu0 0.0
    %1811 = vmatpush2.msra.mxu0 0.0
    %1812 = vmatprep.subr.mxu0 0.0
    %1813 = vmatpush2.msra.mxu0 0.0
    %1814 = vmatprep.subr.mxu0 0.0
    %1815 = vmatpush2.msra.mxu0 0.0
    %1816 = vmatprep.subr.mxu0 0.0
    %1817 = vmatpush2.msra.mxu0 0.0
    %1818 = vmatprep.subr.mxu0 0.0
    %1819 = vmatpush2.msra.mxu0 0.0
    %1820 = vmatprep.subr.mxu0 0.0
    %1821 = vmatpush2.msra.mxu0 0.0
    %1822 = vmatprep.subr.mxu0 0.0
    %1823 = vmatpush2.msra.mxu0 0.0
    %1824 = vmatprep.subr.mxu0 0.0
    %1825 = vmatpush2.msra.mxu0 0.0
    %1826 = vmatprep.subr.mxu0 0.0
    %1827 = vmatpush2.msra.mxu0 0.0
    %1828 = vmatprep.subr.mxu0 0.0
    %1829 = vmatpush2.msra.mxu0 0.0
    %1830 = vmatprep.mubr.f32.mxu0 0.0
    %v1831 = vand.u32 %v1282, 4294901760
    %1832 = vmatmul.mubr.f32.gmra.mxu0 %v1831
    %v1833 = vpop.f32.mrf.mxu0
    %v1834 = vadd.f32 %v1715, %v1833
    %v1835 = vpop.f32.mrf.mxu0
    %1836 = vdwg.mxu0
    %1837 = vmatprep.subr.mxu0 0.0
    %v1838 = vand.u32 %v175, 4294901760
    %1839 = vmatpush1.msra.mxu0 %v1838
    %1840 = vmatprep.subr.mxu0 0.0
    %v1841 = vand.u32 %v174, 4294901760
    %1842 = vmatpush1.msra.mxu0 %v1841
    %1843 = vmatprep.subr.mxu0 0.0
    %v1844 = vand.u32 %v173, 4294901760
    %1845 = vmatpush1.msra.mxu0 %v1844
    %1846 = vmatprep.subr.mxu0 0.0
    %v1847 = vand.u32 %v172, 4294901760
    %1848 = vmatpush1.msra.mxu0 %v1847
    %1849 = vmatprep.subr.mxu0 0.0
    %v1850 = vand.u32 %v171, 4294901760
    %1851 = vmatpush1.msra.mxu0 %v1850
    %1852 = vmatprep.subr.mxu0 0.0
    %v1853 = vand.u32 %v170, 4294901760
    %1854 = vmatpush1.msra.mxu0 %v1853
    %1855 = vmatprep.subr.mxu0 0.0
    %v1856 = vand.u32 %v169, 4294901760
    %1857 = vmatpush1.msra.mxu0 %v1856
    %1858 = vmatprep.subr.mxu0 0.0
    %v1859 = vand.u32 %v168, 4294901760
    %1860 = vmatpush1.msra.mxu0 %v1859
    %1861 = vmatprep.subr.mxu0 0.0
    %v1862 = vand.u32 %v167, 4294901760
    %1863 = vmatpush1.msra.mxu0 %v1862
    %1864 = vmatprep.subr.mxu0 0.0
    %v1865 = vand.u32 %v166, 4294901760
    %1866 = vmatpush1.msra.mxu0 %v1865
    %1867 = vmatprep.subr.mxu0 0.0
    %v1868 = vand.u32 %v165, 4294901760
    %1869 = vmatpush1.msra.mxu0 %v1868
    %1870 = vmatprep.subr.mxu0 0.0
    %v1871 = vand.u32 %v164, 4294901760
    %1872 = vmatpush1.msra.mxu0 %v1871
    %1873 = vmatprep.subr.mxu0 0.0
    %v1874 = vand.u32 %v163, 4294901760
    %1875 = vmatpush1.msra.mxu0 %v1874
    %1876 = vmatprep.subr.mxu0 0.0
    %v1877 = vand.u32 %v162, 4294901760
    %1878 = vmatpush1.msra.mxu0 %v1877
    %1879 = vmatprep.subr.mxu0 0.0
    %v1880 = vand.u32 %v161, 4294901760
    %1881 = vmatpush1.msra.mxu0 %v1880
    %1882 = vmatprep.subr.mxu0 0.0
    %v1883 = vand.u32 %v160, 4294901760
    %1884 = vmatpush1.msra.mxu0 %v1883
    %1885 = vmatprep.subr.mxu0 0.0
    %1886 = vmatpush2.msra.mxu0 0.0
    %1887 = vmatprep.subr.mxu0 0.0
    %1888 = vmatpush2.msra.mxu0 0.0
    %1889 = vmatprep.subr.mxu0 0.0
    %1890 = vmatpush2.msra.mxu0 0.0
    %1891 = vmatprep.subr.mxu0 0.0
    %1892 = vmatpush2.msra.mxu0 0.0
    %1893 = vmatprep.subr.mxu0 0.0
    %1894 = vmatpush2.msra.mxu0 0.0
    %1895 = vmatprep.subr.mxu0 0.0
    %1896 = vmatpush2.msra.mxu0 0.0
    %1897 = vmatprep.subr.mxu0 0.0
    %1898 = vmatpush2.msra.mxu0 0.0
    %1899 = vmatprep.subr.mxu0 0.0
    %1900 = vmatpush2.msra.mxu0 0.0
    %1901 = vmatprep.subr.mxu0 0.0
    %1902 = vmatpush2.msra.mxu0 0.0
    %1903 = vmatprep.subr.mxu0 0.0
    %1904 = vmatpush2.msra.mxu0 0.0
    %1905 = vmatprep.subr.mxu0 0.0
    %1906 = vmatpush2.msra.mxu0 0.0
    %1907 = vmatprep.subr.mxu0 0.0
    %1908 = vmatpush2.msra.mxu0 0.0
    %1909 = vmatprep.subr.mxu0 0.0
    %1910 = vmatpush2.msra.mxu0 0.0
    %1911 = vmatprep.subr.mxu0 0.0
    %1912 = vmatpush2.msra.mxu0 0.0
    %1913 = vmatprep.subr.mxu0 0.0
    %1914 = vmatpush2.msra.mxu0 0.0
    %1915 = vmatprep.subr.mxu0 0.0
    %1916 = vmatpush2.msra.mxu0 0.0
    %1917 = vmatprep.mubr.f32.mxu0 0.0
    %v1918 = vand.u32 %v1282, 4294901760
    %1919 = vmatmul.mubr.f32.gmra.mxu0 %v1918
    %v1920 = vpop.f32.mrf.mxu0
    %v1921 = vadd.f32 %v1834, %v1920
    %v1922 = vpop.f32.mrf.mxu0
    %1923 = vdwg.mxu0
    %v1924 = vrcp.pop %v814
    %v1925 = vmul.f32 %v1921, %v1924
    %v1926 = vmin.f32 %v1925, 1.0
    %v1927 = vlog2.pop %v1926
    %v1928 = vmul.f32 %v1927, 0.6931472
    %v1929 = vmul.f32 %v1928, 0.3
    %v1930 = vmul.f32 %v1929, 1.442695
    %v1931 = vpow.pop %v1930
    %v1932 = vsub.f32 1.0, %v1931
    %v1933 = vrcp.pop 0.3
    %v1934 = vmul.f32 %v1932, %v1933
    %s1935 = smul.u32 0, 2
    %v1936 = vstv %s1935
    %v1937 = vadd.s32 %v77, %v1936
    %v1938 = vmul.u32 %v1937, 4
    %v1939 = vadd.s32 %v1938, %v39
    %vm1940 = vcmp.lt.s32.totalorder %v1939, 8
    %v1941 = vsel %vm1940, %v1934, 0.0
    %vm1942 = vcmask 25600
    %v1943 = vsel %vm1942, %v1941, 0.0
    %1944 = vadd.xlane.f32.xlu0 %v1943
    %v1945 = vpop.xlane.xlu0 %1944
    %v1946 = vrot.slane %v1945, 4
    %v1947 = vadd.f32 %v1945, %v1946
    %v1948 = vrot.slane %v1947, 2
    %v1949 = vadd.f32 %v1947, %v1948
    %v1950 = vrot.slane %v1949, 1
    %v1951 = vadd.f32 %v1949, %v1950
    %s1952 = vtos %v1951
    %v1953 = vstv %s1952
    %1954 = vst [vmem:[#allocation7] sm:$0x1] %v1953
    // Predicated region
    $region18: #{tpu_custom_call.1} parent=1 // pred_check
      _
    $region19: #{tpu_custom_call.1} parent=1 // pred_check_branch
      %1956 = sbr.rel (0) target = $region21
    $region20: #{tpu_custom_call.1} parent=1 // pred_region
      %s1958 = ssub.s32 16, 16
      %1959 = vsyncadd [#allocation4], %s1958
      %s1961 = sshll.u32 [#allocation7], 4
      %s1962 = int_to_ptr.vmem [resolvable:$true] %s1961
      %1964 = dma.vmem_to_hbm [thread:$0]  %s1962, 16, %s2, [#allocation4]
    $region21: #{tpu_custom_call.1} parent=1 // pred_fallthru
      _
    // Predicated region
    $region22: #{tpu_custom_call.1} parent=1 // pred_check
      _
    $region23: #{tpu_custom_call.1} parent=1 // pred_check_branch
      %1966 = sbr.rel (0) target = $region25
    $region24: #{tpu_custom_call.1} parent=1 // pred_region
      %1967 = dma.done [#allocation4], 16
    $region25: #{tpu_custom_call.1} parent=1 // pred_fallthru
      _
    %1968 = vsyncpa [#allocation3], 1
    %1969 = vsyncpa [#allocation6], 1
    %1970 = vsyncpa [#allocation4], 1

</llo_original>
